<compile_context>
chip_gen: v6e
topology: v6e:2x2x1
jax: 0.10.0
libtpu: 0.0.40
codegen_flags: <defaults>
</compile_context>

<pallas_src>
import jax
import jax.numpy as jnp
from jax import lax
from jax.experimental import pallas as pl
from jax.experimental.pallas import tpu as pltpu

# ----------------------------- model dimensions ------------------------------
B = 2            # batch (jets)
N = 8            # constituents per jet (sequence length)
F = 4            # continuous features per constituent (pt, eta, phi, E)
NUM_IDS = 8      # number of constituent id classes
D = 32           # model / encoder dim
H = 2            # attention heads
DH = D // H      # head dim
E = 64           # MLP hidden dim
NUM_LAYERS = 2   # encoder depth
LN_EPS = 1e-5
BN = B * N
G = B * H        # grouped (batch, head) axis for attention
FIN = F + NUM_IDS            # fused [csts | onehot] feature width
VPACK = 9 * D + E            # per-layer packed vector slab width

_VMEM = pl.BlockSpec(memory_space=pltpu.MemorySpace.VMEM)


# ------------------------------ in-kernel math --------------------------------
def _layernorm(x, g, b):
    mu = jnp.mean(x, axis=-1, keepdims=True)
    var = jnp.mean((x - mu) ** 2, axis=-1, keepdims=True)
    return (x - mu) * lax.rsqrt(var + LN_EPS) * g + b


def _erf(z):
    # Abramowitz & Stegun 7.1.26 (max abs err ~1.5e-7); only exp/mul/where,
    # all with guaranteed Mosaic lowerings.
    a1, a2, a3 = 0.254829592, -0.284496736, 1.421413741
    a4, a5, p = -1.453152027, 1.061405429, 0.3275911
    sgn = jnp.where(z >= 0.0, 1.0, -1.0)
    za = jnp.abs(z)
    t = 1.0 / (1.0 + p * za)
    poly = ((((a5 * t + a4) * t + a3) * t + a2) * t + a1) * t
    return sgn * (1.0 - poly * jnp.exp(-za * za))


def _gelu_exact(x):
    # torch.nn.GELU default = exact erf form (NOT the tanh approximation).
    return 0.5 * x * (1.0 + _erf(x * 0.7071067811865476))


def _group_heads(t):
    # (BN, D) -> (B*H, N, DH), grouped (b, h). Only lane slices, leading-dim
    # reshapes and an outer-axis concat (all cheap / safe Mosaic lowerings).
    parts = [t[:, h * DH:(h + 1) * DH].reshape(B, 1, N, DH) for h in range(H)]
    return jnp.concatenate(parts, axis=1).reshape(G, N, DH)


def _ungroup_heads(o):
    # (B*H, N, DH) -> (BN, D) in the natural head-concat feature layout.
    o4 = o.reshape(B, H, N, DH)
    return jnp.concatenate([o4[:, h] for h in range(H)], axis=-1).reshape(BN, D)


# ------------------------------ fused kernel ----------------------------------
def jet_backbone_kernel(
    feats_ref,          # (BN, F+NUM_IDS) f32   [csts | onehot(csts_id)]
    maskf_ref,          # (B*H, 1, N)     f32   key-padding mask, head-repeated
    w_embed_ref,        # (F+NUM_IDS, D)  bf16  fused [csts_emb_w ; id_table]
    w_qkv_ref,          # (L, 3, D, D)    bf16
    wo_ref,             # (L, D, D)       bf16
    w1_ref,             # (L, D, E)       bf16
    w2_ref,             # (L, E, D)       bf16
    vecs_ref,           # (L, 9D+E)       f32   packed per-layer LN/bias vectors
    gvecs_ref,          # (3, D)          f32   [emb_b; final_ln_g; final_ln_b]
    out_ref,            # (BN, D)         f32
):
    f32, bf16 = jnp.float32, jnp.bfloat16

    # ---- fused constituent + id embedding (one matmul) ----------------------
    x = jnp.dot(feats_ref[...].astype(bf16), w_embed_ref[...],
                preferred_element_type=f32) + gvecs_ref[0]            # (BN, D)

    # key-padding additive bias, hoisted out of the layer loop: (B*H, 1, N)
    bias_g = jnp.where(maskf_ref[...] > 0.5, 0.0, -1e9)
    scale = 1.0 / (DH ** 0.5)

    # ---- NUM_LAYERS pre-LN transformer layers (statically unrolled) ---------
    for li in range(NUM_LAYERS):
        vrow = vecs_ref[li]                                           # (9D+E,)
        ln1_g = vrow[0 * D:1 * D]
        ln1_b = vrow[1 * D:2 * D]
        b_q = vrow[2 * D:3 * D]
        b_k = vrow[3 * D:4 * D]
        b_v = vrow[4 * D:5 * D]
        b_o = vrow[5 * D:6 * D]
        ln2_g = vrow[6 * D:7 * D]
        ln2_b = vrow[7 * D:8 * D]
        b_1 = vrow[8 * D:8 * D + E]
        b_2 = vrow[8 * D + E:9 * D + E]
        wqkv_l = w_qkv_ref[li]                                        # (3, D, D)

        # --- multi-head self-attention (non-causal, key-padding mask only) ---
        xn = _layernorm(x, ln1_g, ln1_b).astype(bf16)
        q = jnp.dot(xn, wqkv_l[0], preferred_element_type=f32) + b_q  # (BN, D)
        k = jnp.dot(xn, wqkv_l[1], preferred_element_type=f32) + b_k
        v = jnp.dot(xn, wqkv_l[2], preferred_element_type=f32) + b_v

        qh = _group_heads(q).astype(bf16)                             # (G, N, DH)
        kh = _group_heads(k).astype(bf16)
        vh = _group_heads(v).astype(bf16)

        s = jnp.einsum("gnd,gmd->gnm", qh, kh,
                       preferred_element_type=f32) * scale + bias_g   # (G, N, N)
        s = s - jnp.max(s, axis=-1, keepdims=True)
        p = jnp.exp(s)
        p = p * pl.reciprocal(jnp.sum(p, axis=-1, keepdims=True), approx=True)
        o = jnp.einsum("gnm,gmd->gnd", p.astype(bf16), vh,
                       preferred_element_type=f32)                    # (G, N, DH)

        # single full-K output projection (no per-head K=DH matmuls)
        attn = jnp.dot(_ungroup_heads(o).astype(bf16), wo_ref[li],
                       preferred_element_type=f32) + b_o
        x = x + attn

        # --- MLP block ---
        hn = _layernorm(x, ln2_g, ln2_b).astype(bf16)
        m = jnp.dot(hn, w1_ref[li], preferred_element_type=f32) + b_1
        m = _gelu_exact(m)
        m = jnp.dot(m.astype(bf16), w2_ref[li], preferred_element_type=f32) + b_2
        x = x + m

    # ---- final encoder LayerNorm --------------------------------------------
    out_ref[...] = _layernorm(x, gvecs_ref[1], gvecs_ref[2])


# ------------------------------ parameters ------------------------------------
def init_params(key):
    keys = jax.random.split(key, 2 + 6 * NUM_LAYERS)
    k_emb, k_tab, lkeys = keys[0], keys[1], keys[2:]
    nrm = lambda k, shape, s: jax.random.normal(k, shape, jnp.float32) * s

    w_qkv, wo, w1, w2 = [], [], [], []
    for i in range(NUM_LAYERS):
        kq, kk, kv, ko, km1, km2 = lkeys[6 * i: 6 * (i + 1)]
        w_qkv.append(jnp.stack([nrm(kq, (D, D), 0.05),
                                nrm(kk, (D, D), 0.05),
                                nrm(kv, (D, D), 0.05)]))              # (3, D, D)
        wo.append(nrm(ko, (D, D), 0.05))
        w1.append(nrm(km1, (D, E), 0.05))
        w2.append(nrm(km2, (E, D), 0.05))

    # fused embedding weight: [csts_emb_w ; csts_id_table] -> ((F+NUM_IDS), D)
    w_embed = jnp.concatenate([nrm(k_emb, (F, D), 0.1),
                               nrm(k_tab, (NUM_IDS, D), 0.1)], axis=0)

    L = NUM_LAYERS
    ones_D = jnp.ones((L, D), jnp.float32)
    zeros_D = jnp.zeros((L, D), jnp.float32)
    zeros_E = jnp.zeros((L, E), jnp.float32)
    # packed per-layer vectors (order must match the kernel's slicing):
    # [ln1_g, ln1_b, b_q, b_k, b_v, b_o, ln2_g, ln2_b, b1, b2]
    vecs = jnp.concatenate([ones_D, zeros_D,
                            zeros_D, zeros_D, zeros_D,
                            zeros_D,
                            ones_D, zeros_D,
                            zeros_E, zeros_D], axis=1)                # (L, 9D+E)
    # packed global vectors: [emb_bias; final_ln_g; final_ln_b]
    gvecs = jnp.stack([jnp.zeros((D,), jnp.float32),
                       jnp.ones((D,), jnp.float32),
                       jnp.zeros((D,), jnp.float32)])                 # (3, D)

    return {
        "w_embed": w_embed.astype(jnp.bfloat16),       # (F+NUM_IDS, D)
        "w_qkv": jnp.stack(w_qkv).astype(jnp.bfloat16),  # (L, 3, D, D)
        "wo": jnp.stack(wo).astype(jnp.bfloat16),        # (L, D, D)
        "w1": jnp.stack(w1).astype(jnp.bfloat16),        # (L, D, E)
        "w2": jnp.stack(w2).astype(jnp.bfloat16),        # (L, E, D)
        "vecs": vecs,                                    # (L, 9D+E) f32
        "gvecs": gvecs,                                  # (3, D)    f32
    }


# ------------------------------ forward ----------------------------------------
@jax.jit
def jet_backbone_forward(params, csts, csts_id, mask):
    """Mirrors JetBackbone.forward: (csts, csts_id, mask) -> (x, new_mask)."""
    csts_flat = csts.reshape(BN, F).astype(jnp.float32)
    onehot = jax.nn.one_hot(csts_id.reshape(BN), NUM_IDS, dtype=jnp.float32)
    feats = jnp.concatenate([csts_flat, onehot], axis=1)          # (BN, F+NUM_IDS)
    # key-padding mask repeated per head, grouped (b, h): (B*H, 1, N)
    maskf = jnp.repeat(mask.astype(jnp.float32)[:, None, :], H, axis=0)

    inputs = (
        feats, maskf,
        params["w_embed"], params["w_qkv"], params["wo"],
        params["w1"], params["w2"], params["vecs"], params["gvecs"],
    )
    x = pl.pallas_call(
        jet_backbone_kernel,
        out_shape=jax.ShapeDtypeStruct((BN, D), jnp.float32),
        in_specs=[_VMEM] * len(inputs),
        out_specs=_VMEM,
    )(*inputs)

    # ctxt_emb is None here -> nothing prepended; get_combined_mask(mask) == mask.
    # TODO(synk): extend new_mask if the real encoder adds register/ctxt tokens.
    return x.reshape(B, N, D), mask


# ------------------------------ main --------------------------------------------
if __name__ == "__main__":
    key = jax.random.PRNGKey(0)
    kp, k1, k2 = jax.random.split(key, 3)

    params = init_params(kp)

    csts = jax.random.normal(k1, (B, N, F), jnp.float32)
    csts_id = jax.random.randint(k2, (B, N), 0, NUM_IDS, jnp.int32)
    lengths = jnp.array([N, N - 3], jnp.int32)                 # second jet is padded
    mask = jnp.arange(N)[None, :] < lengths[:, None]           # (B, N) bool

    x_out, new_mask = jet_backbone_forward(params, csts, csts_id, mask)
    jax.block_until_ready(x_out)
    jax.block_until_ready(new_mask)

    assert x_out.shape == (B, N, D)
    assert new_mask.shape == (B, N)
    assert bool(jnp.all(jnp.isfinite(x_out)))
    print("KERNEL_OK")
</pallas_src>

<mosaic_0001>
module attributes {stable_mosaic.version = 11 : i64} {
  func.func @jet_backbone_kernel(%arg0: memref<16x12xf32, #tpu.memory_space<vmem>>, %arg1: memref<4x1x8xf32, #tpu.memory_space<vmem>>, %arg2: memref<12x32xbf16, #tpu.memory_space<vmem>>, %arg3: memref<2x3x32x32xbf16, #tpu.memory_space<vmem>>, %arg4: memref<2x32x32xbf16, #tpu.memory_space<vmem>>, %arg5: memref<2x32x64xbf16, #tpu.memory_space<vmem>>, %arg6: memref<2x64x32xbf16, #tpu.memory_space<vmem>>, %arg7: memref<2x352xf32, #tpu.memory_space<vmem>>, %arg8: memref<3x32xf32, #tpu.memory_space<vmem>>, %arg9: memref<16x32xf32, #tpu.memory_space<vmem>>) attributes {dimension_semantics = [], scalar_prefetch = 0 : i64, scratch_operands = 0 : i64, tpu.core_type = #tpu.core_type<tc>} {
    %c0 = arith.constant 0 : index
    %c0_0 = arith.constant 0 : index
    %0 = vector.load %arg0[%c0, %c0_0] : memref<16x12xf32, #tpu.memory_space<vmem>>, vector<16x12xf32>
    %1 = arith.truncf %0 : vector<16x12xf32> to vector<16x12xbf16>
    %c0_1 = arith.constant 0 : index
    %c0_2 = arith.constant 0 : index
    %2 = vector.load %arg2[%c0_1, %c0_2] : memref<12x32xbf16, #tpu.memory_space<vmem>>, vector<12x32xbf16>
    %cst = arith.constant dense<0.000000e+00> : vector<16x32xf32>
    %3 = tpu.matmul %1, %2, %cst {dimension_numbers = #tpu.dot_dimension_numbers<[1], [0], [0], [1], [0, 0, 1, 1], [], []>} : vector<16x12xbf16>, vector<12x32xbf16>, vector<16x32xf32> -> vector<16x32xf32>
    %c0_3 = arith.constant 0 : index
    %c0_4 = arith.constant 0 : index
    %4 = vector.load %arg8[%c0_3, %c0_4] : memref<3x32xf32, #tpu.memory_space<vmem>>, vector<1x32xf32>
    %5 = vector.shape_cast %4 : vector<1x32xf32> to vector<32xf32>
    %6 = vector.shape_cast %5 : vector<32xf32> to vector<1x32xf32>
    %7 = vector.broadcast %6 : vector<1x32xf32> to vector<16x32xf32>
    %8 = arith.addf %3, %7 : vector<16x32xf32>
    %c0_5 = arith.constant 0 : index
    %c0_6 = arith.constant 0 : index
    %c0_7 = arith.constant 0 : index
    %9 = vector.load %arg1[%c0_5, %c0_6, %c0_7] : memref<4x1x8xf32, #tpu.memory_space<vmem>>, vector<4x1x8xf32>
    %cst_8 = arith.constant 5.000000e-01 : f32
    %10 = vector.broadcast %cst_8 : f32 to vector<4x1x8xf32>
    %11 = arith.cmpf ogt, %9, %10 : vector<4x1x8xf32>
    %cst_9 = arith.constant 0.000000e+00 : f32
    %cst_10 = arith.constant -1.000000e+09 : f32
    %12 = vector.broadcast %cst_9 : f32 to vector<4x1x8xf32>
    %13 = vector.broadcast %cst_10 : f32 to vector<4x1x8xf32>
    %14 = arith.select %11, %12, %13 : vector<4x1x8xi1>, vector<4x1x8xf32>
    %c0_11 = arith.constant 0 : index
    %c0_12 = arith.constant 0 : index
    %15 = vector.load %arg7[%c0_11, %c0_12] : memref<2x352xf32, #tpu.memory_space<vmem>>, vector<1x352xf32>
    %16 = vector.shape_cast %15 : vector<1x352xf32> to vector<352xf32>
    %17 = vector.extract_strided_slice %16 {offsets = [0], sizes = [32], strides = [1]} : vector<352xf32> to vector<32xf32>
    %18 = vector.extract_strided_slice %16 {offsets = [32], sizes = [32], strides = [1]} : vector<352xf32> to vector<32xf32>
    %19 = vector.extract_strided_slice %16 {offsets = [64], sizes = [32], strides = [1]} : vector<352xf32> to vector<32xf32>
    %20 = vector.extract_strided_slice %16 {offsets = [96], sizes = [32], strides = [1]} : vector<352xf32> to vector<32xf32>
    %21 = vector.extract_strided_slice %16 {offsets = [128], sizes = [32], strides = [1]} : vector<352xf32> to vector<32xf32>
    %22 = vector.extract_strided_slice %16 {offsets = [160], sizes = [32], strides = [1]} : vector<352xf32> to vector<32xf32>
    %23 = vector.extract_strided_slice %16 {offsets = [192], sizes = [32], strides = [1]} : vector<352xf32> to vector<32xf32>
    %24 = vector.extract_strided_slice %16 {offsets = [224], sizes = [32], strides = [1]} : vector<352xf32> to vector<32xf32>
    %25 = vector.extract_strided_slice %16 {offsets = [256], sizes = [64], strides = [1]} : vector<352xf32> to vector<64xf32>
    %26 = vector.extract_strided_slice %16 {offsets = [320], sizes = [32], strides = [1]} : vector<352xf32> to vector<32xf32>
    %c0_13 = arith.constant 0 : index
    %c0_14 = arith.constant 0 : index
    %c0_15 = arith.constant 0 : index
    %c0_16 = arith.constant 0 : index
    %27 = vector.load %arg3[%c0_13, %c0_14, %c0_15, %c0_16] : memref<2x3x32x32xbf16, #tpu.memory_space<vmem>>, vector<1x3x32x32xbf16>
    %28 = vector.shape_cast %27 : vector<1x3x32x32xbf16> to vector<3x32x32xbf16>
    %cst_17 = arith.constant dense<0.000000e+00> : vector<16xf32>
    %29 = vector.multi_reduction <add>, %8, %cst_17 [1] : vector<16x32xf32> to vector<16xf32>
    %30 = vector.shape_cast %29 : vector<16xf32> to vector<16x1xf32>
    %cst_18 = arith.constant 3.200000e+01 : f32
    %31 = vector.broadcast %cst_18 : f32 to vector<16x1xf32>
    %32 = arith.divf %30, %31 : vector<16x1xf32>
    %33 = vector.broadcast %32 : vector<16x1xf32> to vector<16x32xf32>
    %34 = arith.subf %8, %33 : vector<16x32xf32>
    %35 = arith.mulf %34, %34 : vector<16x32xf32>
    %cst_19 = arith.constant dense<0.000000e+00> : vector<16xf32>
    %36 = vector.multi_reduction <add>, %35, %cst_19 [1] : vector<16x32xf32> to vector<16xf32>
    %37 = vector.shape_cast %36 : vector<16xf32> to vector<16x1xf32>
    %cst_20 = arith.constant 3.200000e+01 : f32
    %38 = vector.broadcast %cst_20 : f32 to vector<16x1xf32>
    %39 = arith.divf %37, %38 : vector<16x1xf32>
    %40 = vector.broadcast %32 : vector<16x1xf32> to vector<16x32xf32>
    %41 = arith.subf %8, %40 : vector<16x32xf32>
    %cst_21 = arith.constant 9.99999974E-6 : f32
    %42 = vector.broadcast %cst_21 : f32 to vector<16x1xf32>
    %43 = arith.addf %39, %42 : vector<16x1xf32>
    %44 = math.rsqrt %43 : vector<16x1xf32>
    %45 = vector.broadcast %44 : vector<16x1xf32> to vector<16x32xf32>
    %46 = arith.mulf %41, %45 : vector<16x32xf32>
    %47 = vector.shape_cast %17 : vector<32xf32> to vector<1x32xf32>
    %48 = vector.broadcast %47 : vector<1x32xf32> to vector<16x32xf32>
    %49 = arith.mulf %46, %48 : vector<16x32xf32>
    %50 = vector.shape_cast %18 : vector<32xf32> to vector<1x32xf32>
    %51 = vector.broadcast %50 : vector<1x32xf32> to vector<16x32xf32>
    %52 = arith.addf %49, %51 : vector<16x32xf32>
    %53 = arith.truncf %52 : vector<16x32xf32> to vector<16x32xbf16>
    %54 = vector.extract_strided_slice %28 {offsets = [0, 0, 0], sizes = [1, 32, 32], strides = [1, 1, 1]} : vector<3x32x32xbf16> to vector<1x32x32xbf16>
    %55 = vector.shape_cast %54 : vector<1x32x32xbf16> to vector<32x32xbf16>
    %cst_22 = arith.constant dense<0.000000e+00> : vector<16x32xf32>
    %56 = tpu.matmul %53, %55, %cst_22 {dimension_numbers = #tpu.dot_dimension_numbers<[1], [0], [0], [1], [0, 0, 1, 1], [], []>} : vector<16x32xbf16>, vector<32x32xbf16>, vector<16x32xf32> -> vector<16x32xf32>
    %57 = vector.shape_cast %19 : vector<32xf32> to vector<1x32xf32>
    %58 = vector.broadcast %57 : vector<1x32xf32> to vector<16x32xf32>
    %59 = arith.addf %56, %58 : vector<16x32xf32>
    %60 = vector.extract_strided_slice %28 {offsets = [1, 0, 0], sizes = [1, 32, 32], strides = [1, 1, 1]} : vector<3x32x32xbf16> to vector<1x32x32xbf16>
    %61 = vector.shape_cast %60 : vector<1x32x32xbf16> to vector<32x32xbf16>
    %cst_23 = arith.constant dense<0.000000e+00> : vector<16x32xf32>
    %62 = tpu.matmul %53, %61, %cst_23 {dimension_numbers = #tpu.dot_dimension_numbers<[1], [0], [0], [1], [0, 0, 1, 1], [], []>} : vector<16x32xbf16>, vector<32x32xbf16>, vector<16x32xf32> -> vector<16x32xf32>
    %63 = vector.shape_cast %20 : vector<32xf32> to vector<1x32xf32>
    %64 = vector.broadcast %63 : vector<1x32xf32> to vector<16x32xf32>
    %65 = arith.addf %62, %64 : vector<16x32xf32>
    %66 = vector.extract_strided_slice %28 {offsets = [2, 0, 0], sizes = [1, 32, 32], strides = [1, 1, 1]} : vector<3x32x32xbf16> to vector<1x32x32xbf16>
    %67 = vector.shape_cast %66 : vector<1x32x32xbf16> to vector<32x32xbf16>
    %cst_24 = arith.constant dense<0.000000e+00> : vector<16x32xf32>
    %68 = tpu.matmul %53, %67, %cst_24 {dimension_numbers = #tpu.dot_dimension_numbers<[1], [0], [0], [1], [0, 0, 1, 1], [], []>} : vector<16x32xbf16>, vector<32x32xbf16>, vector<16x32xf32> -> vector<16x32xf32>
    %69 = vector.shape_cast %21 : vector<32xf32> to vector<1x32xf32>
    %70 = vector.broadcast %69 : vector<1x32xf32> to vector<16x32xf32>
    %71 = arith.addf %68, %70 : vector<16x32xf32>
    %72 = vector.extract_strided_slice %59 {offsets = [0, 0], sizes = [16, 16], strides = [1, 1]} : vector<16x32xf32> to vector<16x16xf32>
    %73 = vector.shape_cast %72 : vector<16x16xf32> to vector<2x1x8x16xf32>
    %74 = vector.extract_strided_slice %59 {offsets = [0, 16], sizes = [16, 16], strides = [1, 1]} : vector<16x32xf32> to vector<16x16xf32>
    %75 = vector.shape_cast %74 : vector<16x16xf32> to vector<2x1x8x16xf32>
    %76 = tpu.concatenate %73, %75 in 1 : vector<2x1x8x16xf32>, vector<2x1x8x16xf32> -> vector<2x2x8x16xf32>
    %77 = vector.shape_cast %76 : vector<2x2x8x16xf32> to vector<4x8x16xf32>
    %78 = arith.truncf %77 : vector<4x8x16xf32> to vector<4x8x16xbf16>
    %79 = vector.extract_strided_slice %65 {offsets = [0, 0], sizes = [16, 16], strides = [1, 1]} : vector<16x32xf32> to vector<16x16xf32>
    %80 = vector.shape_cast %79 : vector<16x16xf32> to vector<2x1x8x16xf32>
    %81 = vector.extract_strided_slice %65 {offsets = [0, 16], sizes = [16, 16], strides = [1, 1]} : vector<16x32xf32> to vector<16x16xf32>
    %82 = vector.shape_cast %81 : vector<16x16xf32> to vector<2x1x8x16xf32>
    %83 = tpu.concatenate %80, %82 in 1 : vector<2x1x8x16xf32>, vector<2x1x8x16xf32> -> vector<2x2x8x16xf32>
    %84 = vector.shape_cast %83 : vector<2x2x8x16xf32> to vector<4x8x16xf32>
    %85 = arith.truncf %84 : vector<4x8x16xf32> to vector<4x8x16xbf16>
    %86 = vector.extract_strided_slice %71 {offsets = [0, 0], sizes = [16, 16], strides = [1, 1]} : vector<16x32xf32> to vector<16x16xf32>
    %87 = vector.shape_cast %86 : vector<16x16xf32> to vector<2x1x8x16xf32>
    %88 = vector.extract_strided_slice %71 {offsets = [0, 16], sizes = [16, 16], strides = [1, 1]} : vector<16x32xf32> to vector<16x16xf32>
    %89 = vector.shape_cast %88 : vector<16x16xf32> to vector<2x1x8x16xf32>
    %90 = tpu.concatenate %87, %89 in 1 : vector<2x1x8x16xf32>, vector<2x1x8x16xf32> -> vector<2x2x8x16xf32>
    %91 = vector.shape_cast %90 : vector<2x2x8x16xf32> to vector<4x8x16xf32>
    %92 = arith.truncf %91 : vector<4x8x16xf32> to vector<4x8x16xbf16>
    "tpu.trace_start"() <{level = 10 : i32, message = "gnd,gmd->gnm"}> : () -> ()
    %cst_25 = arith.constant dense<0.000000e+00> : vector<4x8x8xf32>
    %93 = tpu.matmul %78, %85, %cst_25 {dimension_numbers = #tpu.dot_dimension_numbers<[2], [2], [1], [1], [0, 0, 0, 1, 1, 1], [0], [0]>} : vector<4x8x16xbf16>, vector<4x8x16xbf16>, vector<4x8x8xf32> -> vector<4x8x8xf32>
    "tpu.trace_stop"() : () -> ()
    %cst_26 = arith.constant 2.500000e-01 : f32
    %94 = vector.broadcast %cst_26 : f32 to vector<4x8x8xf32>
    %95 = arith.mulf %93, %94 : vector<4x8x8xf32>
    %96 = vector.broadcast %14 : vector<4x1x8xf32> to vector<4x8x8xf32>
    %97 = arith.addf %95, %96 : vector<4x8x8xf32>
    %cst_27 = arith.constant dense<0xFF800000> : vector<4x8xf32>
    %98 = vector.multi_reduction <maximumf>, %97, %cst_27 [2] : vector<4x8x8xf32> to vector<4x8xf32>
    %99 = vector.shape_cast %98 : vector<4x8xf32> to vector<4x8x1xf32>
    %100 = vector.broadcast %99 : vector<4x8x1xf32> to vector<4x8x8xf32>
    %101 = arith.subf %97, %100 : vector<4x8x8xf32>
    %102 = math.exp %101 : vector<4x8x8xf32>
    %cst_28 = arith.constant dense<0.000000e+00> : vector<4x8xf32>
    %103 = vector.multi_reduction <add>, %102, %cst_28 [2] : vector<4x8x8xf32> to vector<4x8xf32>
    %104 = vector.shape_cast %103 : vector<4x8xf32> to vector<4x8x1xf32>
    %105 = tpu.reciprocal %104 {approx = true} : vector<4x8x1xf32> -> vector<4x8x1xf32>
    %106 = vector.broadcast %105 : vector<4x8x1xf32> to vector<4x8x8xf32>
    %107 = arith.mulf %102, %106 : vector<4x8x8xf32>
    %108 = arith.truncf %107 : vector<4x8x8xf32> to vector<4x8x8xbf16>
    "tpu.trace_start"() <{level = 10 : i32, message = "gnm,gmd->gnd"}> : () -> ()
    %cst_29 = arith.constant dense<0.000000e+00> : vector<4x8x16xf32>
    %109 = tpu.matmul %108, %92, %cst_29 {dimension_numbers = #tpu.dot_dimension_numbers<[2], [1], [1], [2], [0, 0, 0, 1, 1, 2], [0], [0]>} : vector<4x8x8xbf16>, vector<4x8x16xbf16>, vector<4x8x16xf32> -> vector<4x8x16xf32>
    "tpu.trace_stop"() : () -> ()
    %110 = vector.shape_cast %109 : vector<4x8x16xf32> to vector<2x2x8x16xf32>
    %111 = vector.extract_strided_slice %110 {offsets = [0, 0, 0, 0], sizes = [2, 1, 8, 16], strides = [1, 1, 1, 1]} : vector<2x2x8x16xf32> to vector<2x1x8x16xf32>
    %112 = vector.shape_cast %111 : vector<2x1x8x16xf32> to vector<2x8x16xf32>
    %113 = vector.extract_strided_slice %110 {offsets = [0, 1, 0, 0], sizes = [2, 1, 8, 16], strides = [1, 1, 1, 1]} : vector<2x2x8x16xf32> to vector<2x1x8x16xf32>
    %114 = vector.shape_cast %113 : vector<2x1x8x16xf32> to vector<2x8x16xf32>
    %115 = tpu.concatenate %112, %114 in 2 : vector<2x8x16xf32>, vector<2x8x16xf32> -> vector<2x8x32xf32>
    %116 = vector.shape_cast %115 : vector<2x8x32xf32> to vector<16x32xf32>
    %117 = arith.truncf %116 : vector<16x32xf32> to vector<16x32xbf16>
    %c0_30 = arith.constant 0 : index
    %c0_31 = arith.constant 0 : index
    %c0_32 = arith.constant 0 : index
    %118 = vector.load %arg4[%c0_30, %c0_31, %c0_32] : memref<2x32x32xbf16, #tpu.memory_space<vmem>>, vector<1x32x32xbf16>
    %119 = vector.shape_cast %118 : vector<1x32x32xbf16> to vector<32x32xbf16>
    %cst_33 = arith.constant dense<0.000000e+00> : vector<16x32xf32>
    %120 = tpu.matmul %117, %119, %cst_33 {dimension_numbers = #tpu.dot_dimension_numbers<[1], [0], [0], [1], [0, 0, 1, 1], [], []>} : vector<16x32xbf16>, vector<32x32xbf16>, vector<16x32xf32> -> vector<16x32xf32>
    %121 = vector.shape_cast %22 : vector<32xf32> to vector<1x32xf32>
    %122 = vector.broadcast %121 : vector<1x32xf32> to vector<16x32xf32>
    %123 = arith.addf %120, %122 : vector<16x32xf32>
    %124 = arith.addf %8, %123 : vector<16x32xf32>
    %cst_34 = arith.constant dense<0.000000e+00> : vector<16xf32>
    %125 = vector.multi_reduction <add>, %124, %cst_34 [1] : vector<16x32xf32> to vector<16xf32>
    %126 = vector.shape_cast %125 : vector<16xf32> to vector<16x1xf32>
    %cst_35 = arith.constant 3.200000e+01 : f32
    %127 = vector.broadcast %cst_35 : f32 to vector<16x1xf32>
    %128 = arith.divf %126, %127 : vector<16x1xf32>
    %129 = vector.broadcast %128 : vector<16x1xf32> to vector<16x32xf32>
    %130 = arith.subf %124, %129 : vector<16x32xf32>
    %131 = arith.mulf %130, %130 : vector<16x32xf32>
    %cst_36 = arith.constant dense<0.000000e+00> : vector<16xf32>
    %132 = vector.multi_reduction <add>, %131, %cst_36 [1] : vector<16x32xf32> to vector<16xf32>
    %133 = vector.shape_cast %132 : vector<16xf32> to vector<16x1xf32>
    %cst_37 = arith.constant 3.200000e+01 : f32
    %134 = vector.broadcast %cst_37 : f32 to vector<16x1xf32>
    %135 = arith.divf %133, %134 : vector<16x1xf32>
    %136 = vector.broadcast %128 : vector<16x1xf32> to vector<16x32xf32>
    %137 = arith.subf %124, %136 : vector<16x32xf32>
    %cst_38 = arith.constant 9.99999974E-6 : f32
    %138 = vector.broadcast %cst_38 : f32 to vector<16x1xf32>
    %139 = arith.addf %135, %138 : vector<16x1xf32>
    %140 = math.rsqrt %139 : vector<16x1xf32>
    %141 = vector.broadcast %140 : vector<16x1xf32> to vector<16x32xf32>
    %142 = arith.mulf %137, %141 : vector<16x32xf32>
    %143 = vector.shape_cast %23 : vector<32xf32> to vector<1x32xf32>
    %144 = vector.broadcast %143 : vector<1x32xf32> to vector<16x32xf32>
    %145 = arith.mulf %142, %144 : vector<16x32xf32>
    %146 = vector.shape_cast %24 : vector<32xf32> to vector<1x32xf32>
    %147 = vector.broadcast %146 : vector<1x32xf32> to vector<16x32xf32>
    %148 = arith.addf %145, %147 : vector<16x32xf32>
    %149 = arith.truncf %148 : vector<16x32xf32> to vector<16x32xbf16>
    %c0_39 = arith.constant 0 : index
    %c0_40 = arith.constant 0 : index
    %c0_41 = arith.constant 0 : index
    %150 = vector.load %arg5[%c0_39, %c0_40, %c0_41] : memref<2x32x64xbf16, #tpu.memory_space<vmem>>, vector<1x32x64xbf16>
    %151 = vector.shape_cast %150 : vector<1x32x64xbf16> to vector<32x64xbf16>
    %cst_42 = arith.constant dense<0.000000e+00> : vector<16x64xf32>
    %152 = tpu.matmul %149, %151, %cst_42 {dimension_numbers = #tpu.dot_dimension_numbers<[1], [0], [0], [1], [0, 0, 1, 1], [], []>} : vector<16x32xbf16>, vector<32x64xbf16>, vector<16x64xf32> -> vector<16x64xf32>
    %153 = vector.shape_cast %25 : vector<64xf32> to vector<1x64xf32>
    %154 = vector.broadcast %153 : vector<1x64xf32> to vector<16x64xf32>
    %155 = arith.addf %152, %154 : vector<16x64xf32>
    %cst_43 = arith.constant 5.000000e-01 : f32
    %156 = vector.broadcast %cst_43 : f32 to vector<16x64xf32>
    %157 = arith.mulf %156, %155 : vector<16x64xf32>
    %cst_44 = arith.constant 0.707106769 : f32
    %158 = vector.broadcast %cst_44 : f32 to vector<16x64xf32>
    %159 = arith.mulf %155, %158 : vector<16x64xf32>
    %cst_45 = arith.constant 0.000000e+00 : f32
    %160 = vector.broadcast %cst_45 : f32 to vector<16x64xf32>
    %161 = arith.cmpf oge, %159, %160 : vector<16x64xf32>
    %cst_46 = arith.constant 1.000000e+00 : f32
    %cst_47 = arith.constant -1.000000e+00 : f32
    %162 = vector.broadcast %cst_46 : f32 to vector<16x64xf32>
    %163 = vector.broadcast %cst_47 : f32 to vector<16x64xf32>
    %164 = arith.select %161, %162, %163 : vector<16x64xi1>, vector<16x64xf32>
    %165 = math.absf %159 : vector<16x64xf32>
    %cst_48 = arith.constant 0.327591091 : f32
    %166 = vector.broadcast %cst_48 : f32 to vector<16x64xf32>
    %167 = arith.mulf %166, %165 : vector<16x64xf32>
    %cst_49 = arith.constant 1.000000e+00 : f32
    %168 = vector.broadcast %cst_49 : f32 to vector<16x64xf32>
    %169 = arith.addf %168, %167 : vector<16x64xf32>
    %cst_50 = arith.constant 1.000000e+00 : f32
    %170 = vector.broadcast %cst_50 : f32 to vector<16x64xf32>
    %171 = arith.divf %170, %169 : vector<16x64xf32>
    %cst_51 = arith.constant 1.06140542 : f32
    %172 = vector.broadcast %cst_51 : f32 to vector<16x64xf32>
    %173 = arith.mulf %172, %171 : vector<16x64xf32>
    %cst_52 = arith.constant -1.45315206 : f32
    %174 = vector.broadcast %cst_52 : f32 to vector<16x64xf32>
    %175 = arith.addf %173, %174 : vector<16x64xf32>
    %176 = arith.mulf %175, %171 : vector<16x64xf32>
    %cst_53 = arith.constant 1.42141378 : f32
    %177 = vector.broadcast %cst_53 : f32 to vector<16x64xf32>
    %178 = arith.addf %176, %177 : vector<16x64xf32>
    %179 = arith.mulf %178, %171 : vector<16x64xf32>
    %cst_54 = arith.constant -0.284496725 : f32
    %180 = vector.broadcast %cst_54 : f32 to vector<16x64xf32>
    %181 = arith.addf %179, %180 : vector<16x64xf32>
    %182 = arith.mulf %181, %171 : vector<16x64xf32>
    %cst_55 = arith.constant 0.254829586 : f32
    %183 = vector.broadcast %cst_55 : f32 to vector<16x64xf32>
    %184 = arith.addf %182, %183 : vector<16x64xf32>
    %185 = arith.mulf %184, %171 : vector<16x64xf32>
    %cst_56 = arith.constant 0.000000e+00 : f32
    %186 = vector.broadcast %cst_56 : f32 to vector<16x64xf32>
    %187 = arith.subf %186, %165 : vector<16x64xf32>
    %188 = arith.mulf %187, %165 : vector<16x64xf32>
    %189 = math.exp %188 : vector<16x64xf32>
    %190 = arith.mulf %185, %189 : vector<16x64xf32>
    %cst_57 = arith.constant 1.000000e+00 : f32
    %191 = vector.broadcast %cst_57 : f32 to vector<16x64xf32>
    %192 = arith.subf %191, %190 : vector<16x64xf32>
    %193 = arith.mulf %164, %192 : vector<16x64xf32>
    %cst_58 = arith.constant 1.000000e+00 : f32
    %194 = vector.broadcast %cst_58 : f32 to vector<16x64xf32>
    %195 = arith.addf %194, %193 : vector<16x64xf32>
    %196 = arith.mulf %157, %195 : vector<16x64xf32>
    %197 = arith.truncf %196 : vector<16x64xf32> to vector<16x64xbf16>
    %c0_59 = arith.constant 0 : index
    %c0_60 = arith.constant 0 : index
    %c0_61 = arith.constant 0 : index
    %198 = vector.load %arg6[%c0_59, %c0_60, %c0_61] : memref<2x64x32xbf16, #tpu.memory_space<vmem>>, vector<1x64x32xbf16>
    %199 = vector.shape_cast %198 : vector<1x64x32xbf16> to vector<64x32xbf16>
    %cst_62 = arith.constant dense<0.000000e+00> : vector<16x32xf32>
    %200 = tpu.matmul %197, %199, %cst_62 {dimension_numbers = #tpu.dot_dimension_numbers<[1], [0], [0], [1], [0, 0, 1, 1], [], []>} : vector<16x64xbf16>, vector<64x32xbf16>, vector<16x32xf32> -> vector<16x32xf32>
    %201 = vector.shape_cast %26 : vector<32xf32> to vector<1x32xf32>
    %202 = vector.broadcast %201 : vector<1x32xf32> to vector<16x32xf32>
    %203 = arith.addf %200, %202 : vector<16x32xf32>
    %204 = arith.addf %124, %203 : vector<16x32xf32>
    %c1 = arith.constant 1 : index
    %c0_63 = arith.constant 0 : index
    %205 = vector.load %arg7[%c1, %c0_63] : memref<2x352xf32, #tpu.memory_space<vmem>>, vector<1x352xf32>
    %206 = vector.shape_cast %205 : vector<1x352xf32> to vector<352xf32>
    %207 = vector.extract_strided_slice %206 {offsets = [0], sizes = [32], strides = [1]} : vector<352xf32> to vector<32xf32>
    %208 = vector.extract_strided_slice %206 {offsets = [32], sizes = [32], strides = [1]} : vector<352xf32> to vector<32xf32>
    %209 = vector.extract_strided_slice %206 {offsets = [64], sizes = [32], strides = [1]} : vector<352xf32> to vector<32xf32>
    %210 = vector.extract_strided_slice %206 {offsets = [96], sizes = [32], strides = [1]} : vector<352xf32> to vector<32xf32>
    %211 = vector.extract_strided_slice %206 {offsets = [128], sizes = [32], strides = [1]} : vector<352xf32> to vector<32xf32>
    %212 = vector.extract_strided_slice %206 {offsets = [160], sizes = [32], strides = [1]} : vector<352xf32> to vector<32xf32>
    %213 = vector.extract_strided_slice %206 {offsets = [192], sizes = [32], strides = [1]} : vector<352xf32> to vector<32xf32>
    %214 = vector.extract_strided_slice %206 {offsets = [224], sizes = [32], strides = [1]} : vector<352xf32> to vector<32xf32>
    %215 = vector.extract_strided_slice %206 {offsets = [256], sizes = [64], strides = [1]} : vector<352xf32> to vector<64xf32>
    %216 = vector.extract_strided_slice %206 {offsets = [320], sizes = [32], strides = [1]} : vector<352xf32> to vector<32xf32>
    %c1_64 = arith.constant 1 : index
    %c0_65 = arith.constant 0 : index
    %c0_66 = arith.constant 0 : index
    %c0_67 = arith.constant 0 : index
    %217 = vector.load %arg3[%c1_64, %c0_65, %c0_66, %c0_67] : memref<2x3x32x32xbf16, #tpu.memory_space<vmem>>, vector<1x3x32x32xbf16>
    %218 = vector.shape_cast %217 : vector<1x3x32x32xbf16> to vector<3x32x32xbf16>
    %cst_68 = arith.constant dense<0.000000e+00> : vector<16xf32>
    %219 = vector.multi_reduction <add>, %204, %cst_68 [1] : vector<16x32xf32> to vector<16xf32>
    %220 = vector.shape_cast %219 : vector<16xf32> to vector<16x1xf32>
    %cst_69 = arith.constant 3.200000e+01 : f32
    %221 = vector.broadcast %cst_69 : f32 to vector<16x1xf32>
    %222 = arith.divf %220, %221 : vector<16x1xf32>
    %223 = vector.broadcast %222 : vector<16x1xf32> to vector<16x32xf32>
    %224 = arith.subf %204, %223 : vector<16x32xf32>
    %225 = arith.mulf %224, %224 : vector<16x32xf32>
    %cst_70 = arith.constant dense<0.000000e+00> : vector<16xf32>
    %226 = vector.multi_reduction <add>, %225, %cst_70 [1] : vector<16x32xf32> to vector<16xf32>
    %227 = vector.shape_cast %226 : vector<16xf32> to vector<16x1xf32>
    %cst_71 = arith.constant 3.200000e+01 : f32
    %228 = vector.broadcast %cst_71 : f32 to vector<16x1xf32>
    %229 = arith.divf %227, %228 : vector<16x1xf32>
    %230 = vector.broadcast %222 : vector<16x1xf32> to vector<16x32xf32>
    %231 = arith.subf %204, %230 : vector<16x32xf32>
    %cst_72 = arith.constant 9.99999974E-6 : f32
    %232 = vector.broadcast %cst_72 : f32 to vector<16x1xf32>
    %233 = arith.addf %229, %232 : vector<16x1xf32>
    %234 = math.rsqrt %233 : vector<16x1xf32>
    %235 = vector.broadcast %234 : vector<16x1xf32> to vector<16x32xf32>
    %236 = arith.mulf %231, %235 : vector<16x32xf32>
    %237 = vector.shape_cast %207 : vector<32xf32> to vector<1x32xf32>
    %238 = vector.broadcast %237 : vector<1x32xf32> to vector<16x32xf32>
    %239 = arith.mulf %236, %238 : vector<16x32xf32>
    %240 = vector.shape_cast %208 : vector<32xf32> to vector<1x32xf32>
    %241 = vector.broadcast %240 : vector<1x32xf32> to vector<16x32xf32>
    %242 = arith.addf %239, %241 : vector<16x32xf32>
    %243 = arith.truncf %242 : vector<16x32xf32> to vector<16x32xbf16>
    %244 = vector.extract_strided_slice %218 {offsets = [0, 0, 0], sizes = [1, 32, 32], strides = [1, 1, 1]} : vector<3x32x32xbf16> to vector<1x32x32xbf16>
    %245 = vector.shape_cast %244 : vector<1x32x32xbf16> to vector<32x32xbf16>
    %cst_73 = arith.constant dense<0.000000e+00> : vector<16x32xf32>
    %246 = tpu.matmul %243, %245, %cst_73 {dimension_numbers = #tpu.dot_dimension_numbers<[1], [0], [0], [1], [0, 0, 1, 1], [], []>} : vector<16x32xbf16>, vector<32x32xbf16>, vector<16x32xf32> -> vector<16x32xf32>
    %247 = vector.shape_cast %209 : vector<32xf32> to vector<1x32xf32>
    %248 = vector.broadcast %247 : vector<1x32xf32> to vector<16x32xf32>
    %249 = arith.addf %246, %248 : vector<16x32xf32>
    %250 = vector.extract_strided_slice %218 {offsets = [1, 0, 0], sizes = [1, 32, 32], strides = [1, 1, 1]} : vector<3x32x32xbf16> to vector<1x32x32xbf16>
    %251 = vector.shape_cast %250 : vector<1x32x32xbf16> to vector<32x32xbf16>
    %cst_74 = arith.constant dense<0.000000e+00> : vector<16x32xf32>
    %252 = tpu.matmul %243, %251, %cst_74 {dimension_numbers = #tpu.dot_dimension_numbers<[1], [0], [0], [1], [0, 0, 1, 1], [], []>} : vector<16x32xbf16>, vector<32x32xbf16>, vector<16x32xf32> -> vector<16x32xf32>
    %253 = vector.shape_cast %210 : vector<32xf32> to vector<1x32xf32>
    %254 = vector.broadcast %253 : vector<1x32xf32> to vector<16x32xf32>
    %255 = arith.addf %252, %254 : vector<16x32xf32>
    %256 = vector.extract_strided_slice %218 {offsets = [2, 0, 0], sizes = [1, 32, 32], strides = [1, 1, 1]} : vector<3x32x32xbf16> to vector<1x32x32xbf16>
    %257 = vector.shape_cast %256 : vector<1x32x32xbf16> to vector<32x32xbf16>
    %cst_75 = arith.constant dense<0.000000e+00> : vector<16x32xf32>
    %258 = tpu.matmul %243, %257, %cst_75 {dimension_numbers = #tpu.dot_dimension_numbers<[1], [0], [0], [1], [0, 0, 1, 1], [], []>} : vector<16x32xbf16>, vector<32x32xbf16>, vector<16x32xf32> -> vector<16x32xf32>
    %259 = vector.shape_cast %211 : vector<32xf32> to vector<1x32xf32>
    %260 = vector.broadcast %259 : vector<1x32xf32> to vector<16x32xf32>
    %261 = arith.addf %258, %260 : vector<16x32xf32>
    %262 = vector.extract_strided_slice %249 {offsets = [0, 0], sizes = [16, 16], strides = [1, 1]} : vector<16x32xf32> to vector<16x16xf32>
    %263 = vector.shape_cast %262 : vector<16x16xf32> to vector<2x1x8x16xf32>
    %264 = vector.extract_strided_slice %249 {offsets = [0, 16], sizes = [16, 16], strides = [1, 1]} : vector<16x32xf32> to vector<16x16xf32>
    %265 = vector.shape_cast %264 : vector<16x16xf32> to vector<2x1x8x16xf32>
    %266 = tpu.concatenate %263, %265 in 1 : vector<2x1x8x16xf32>, vector<2x1x8x16xf32> -> vector<2x2x8x16xf32>
    %267 = vector.shape_cast %266 : vector<2x2x8x16xf32> to vector<4x8x16xf32>
    %268 = arith.truncf %267 : vector<4x8x16xf32> to vector<4x8x16xbf16>
    %269 = vector.extract_strided_slice %255 {offsets = [0, 0], sizes = [16, 16], strides = [1, 1]} : vector<16x32xf32> to vector<16x16xf32>
    %270 = vector.shape_cast %269 : vector<16x16xf32> to vector<2x1x8x16xf32>
    %271 = vector.extract_strided_slice %255 {offsets = [0, 16], sizes = [16, 16], strides = [1, 1]} : vector<16x32xf32> to vector<16x16xf32>
    %272 = vector.shape_cast %271 : vector<16x16xf32> to vector<2x1x8x16xf32>
    %273 = tpu.concatenate %270, %272 in 1 : vector<2x1x8x16xf32>, vector<2x1x8x16xf32> -> vector<2x2x8x16xf32>
    %274 = vector.shape_cast %273 : vector<2x2x8x16xf32> to vector<4x8x16xf32>
    %275 = arith.truncf %274 : vector<4x8x16xf32> to vector<4x8x16xbf16>
    %276 = vector.extract_strided_slice %261 {offsets = [0, 0], sizes = [16, 16], strides = [1, 1]} : vector<16x32xf32> to vector<16x16xf32>
    %277 = vector.shape_cast %276 : vector<16x16xf32> to vector<2x1x8x16xf32>
    %278 = vector.extract_strided_slice %261 {offsets = [0, 16], sizes = [16, 16], strides = [1, 1]} : vector<16x32xf32> to vector<16x16xf32>
    %279 = vector.shape_cast %278 : vector<16x16xf32> to vector<2x1x8x16xf32>
    %280 = tpu.concatenate %277, %279 in 1 : vector<2x1x8x16xf32>, vector<2x1x8x16xf32> -> vector<2x2x8x16xf32>
    %281 = vector.shape_cast %280 : vector<2x2x8x16xf32> to vector<4x8x16xf32>
    %282 = arith.truncf %281 : vector<4x8x16xf32> to vector<4x8x16xbf16>
    "tpu.trace_start"() <{level = 10 : i32, message = "gnd,gmd->gnm"}> : () -> ()
    %cst_76 = arith.constant dense<0.000000e+00> : vector<4x8x8xf32>
    %283 = tpu.matmul %268, %275, %cst_76 {dimension_numbers = #tpu.dot_dimension_numbers<[2], [2], [1], [1], [0, 0, 0, 1, 1, 1], [0], [0]>} : vector<4x8x16xbf16>, vector<4x8x16xbf16>, vector<4x8x8xf32> -> vector<4x8x8xf32>
    "tpu.trace_stop"() : () -> ()
    %cst_77 = arith.constant 2.500000e-01 : f32
    %284 = vector.broadcast %cst_77 : f32 to vector<4x8x8xf32>
    %285 = arith.mulf %283, %284 : vector<4x8x8xf32>
    %286 = vector.broadcast %14 : vector<4x1x8xf32> to vector<4x8x8xf32>
    %287 = arith.addf %285, %286 : vector<4x8x8xf32>
    %cst_78 = arith.constant dense<0xFF800000> : vector<4x8xf32>
    %288 = vector.multi_reduction <maximumf>, %287, %cst_78 [2] : vector<4x8x8xf32> to vector<4x8xf32>
    %289 = vector.shape_cast %288 : vector<4x8xf32> to vector<4x8x1xf32>
    %290 = vector.broadcast %289 : vector<4x8x1xf32> to vector<4x8x8xf32>
    %291 = arith.subf %287, %290 : vector<4x8x8xf32>
    %292 = math.exp %291 : vector<4x8x8xf32>
    %cst_79 = arith.constant dense<0.000000e+00> : vector<4x8xf32>
    %293 = vector.multi_reduction <add>, %292, %cst_79 [2] : vector<4x8x8xf32> to vector<4x8xf32>
    %294 = vector.shape_cast %293 : vector<4x8xf32> to vector<4x8x1xf32>
    %295 = tpu.reciprocal %294 {approx = true} : vector<4x8x1xf32> -> vector<4x8x1xf32>
    %296 = vector.broadcast %295 : vector<4x8x1xf32> to vector<4x8x8xf32>
    %297 = arith.mulf %292, %296 : vector<4x8x8xf32>
    %298 = arith.truncf %297 : vector<4x8x8xf32> to vector<4x8x8xbf16>
    "tpu.trace_start"() <{level = 10 : i32, message = "gnm,gmd->gnd"}> : () -> ()
    %cst_80 = arith.constant dense<0.000000e+00> : vector<4x8x16xf32>
    %299 = tpu.matmul %298, %282, %cst_80 {dimension_numbers = #tpu.dot_dimension_numbers<[2], [1], [1], [2], [0, 0, 0, 1, 1, 2], [0], [0]>} : vector<4x8x8xbf16>, vector<4x8x16xbf16>, vector<4x8x16xf32> -> vector<4x8x16xf32>
    "tpu.trace_stop"() : () -> ()
    %300 = vector.shape_cast %299 : vector<4x8x16xf32> to vector<2x2x8x16xf32>
    %301 = vector.extract_strided_slice %300 {offsets = [0, 0, 0, 0], sizes = [2, 1, 8, 16], strides = [1, 1, 1, 1]} : vector<2x2x8x16xf32> to vector<2x1x8x16xf32>
    %302 = vector.shape_cast %301 : vector<2x1x8x16xf32> to vector<2x8x16xf32>
    %303 = vector.extract_strided_slice %300 {offsets = [0, 1, 0, 0], sizes = [2, 1, 8, 16], strides = [1, 1, 1, 1]} : vector<2x2x8x16xf32> to vector<2x1x8x16xf32>
    %304 = vector.shape_cast %303 : vector<2x1x8x16xf32> to vector<2x8x16xf32>
    %305 = tpu.concatenate %302, %304 in 2 : vector<2x8x16xf32>, vector<2x8x16xf32> -> vector<2x8x32xf32>
    %306 = vector.shape_cast %305 : vector<2x8x32xf32> to vector<16x32xf32>
    %307 = arith.truncf %306 : vector<16x32xf32> to vector<16x32xbf16>
    %c1_81 = arith.constant 1 : index
    %c0_82 = arith.constant 0 : index
    %c0_83 = arith.constant 0 : index
    %308 = vector.load %arg4[%c1_81, %c0_82, %c0_83] : memref<2x32x32xbf16, #tpu.memory_space<vmem>>, vector<1x32x32xbf16>
    %309 = vector.shape_cast %308 : vector<1x32x32xbf16> to vector<32x32xbf16>
    %cst_84 = arith.constant dense<0.000000e+00> : vector<16x32xf32>
    %310 = tpu.matmul %307, %309, %cst_84 {dimension_numbers = #tpu.dot_dimension_numbers<[1], [0], [0], [1], [0, 0, 1, 1], [], []>} : vector<16x32xbf16>, vector<32x32xbf16>, vector<16x32xf32> -> vector<16x32xf32>
    %311 = vector.shape_cast %212 : vector<32xf32> to vector<1x32xf32>
    %312 = vector.broadcast %311 : vector<1x32xf32> to vector<16x32xf32>
    %313 = arith.addf %310, %312 : vector<16x32xf32>
    %314 = arith.addf %204, %313 : vector<16x32xf32>
    %cst_85 = arith.constant dense<0.000000e+00> : vector<16xf32>
    %315 = vector.multi_reduction <add>, %314, %cst_85 [1] : vector<16x32xf32> to vector<16xf32>
    %316 = vector.shape_cast %315 : vector<16xf32> to vector<16x1xf32>
    %cst_86 = arith.constant 3.200000e+01 : f32
    %317 = vector.broadcast %cst_86 : f32 to vector<16x1xf32>
    %318 = arith.divf %316, %317 : vector<16x1xf32>
    %319 = vector.broadcast %318 : vector<16x1xf32> to vector<16x32xf32>
    %320 = arith.subf %314, %319 : vector<16x32xf32>
    %321 = arith.mulf %320, %320 : vector<16x32xf32>
    %cst_87 = arith.constant dense<0.000000e+00> : vector<16xf32>
    %322 = vector.multi_reduction <add>, %321, %cst_87 [1] : vector<16x32xf32> to vector<16xf32>
    %323 = vector.shape_cast %322 : vector<16xf32> to vector<16x1xf32>
    %cst_88 = arith.constant 3.200000e+01 : f32
    %324 = vector.broadcast %cst_88 : f32 to vector<16x1xf32>
    %325 = arith.divf %323, %324 : vector<16x1xf32>
    %326 = vector.broadcast %318 : vector<16x1xf32> to vector<16x32xf32>
    %327 = arith.subf %314, %326 : vector<16x32xf32>
    %cst_89 = arith.constant 9.99999974E-6 : f32
    %328 = vector.broadcast %cst_89 : f32 to vector<16x1xf32>
    %329 = arith.addf %325, %328 : vector<16x1xf32>
    %330 = math.rsqrt %329 : vector<16x1xf32>
    %331 = vector.broadcast %330 : vector<16x1xf32> to vector<16x32xf32>
    %332 = arith.mulf %327, %331 : vector<16x32xf32>
    %333 = vector.shape_cast %213 : vector<32xf32> to vector<1x32xf32>
    %334 = vector.broadcast %333 : vector<1x32xf32> to vector<16x32xf32>
    %335 = arith.mulf %332, %334 : vector<16x32xf32>
    %336 = vector.shape_cast %214 : vector<32xf32> to vector<1x32xf32>
    %337 = vector.broadcast %336 : vector<1x32xf32> to vector<16x32xf32>
    %338 = arith.addf %335, %337 : vector<16x32xf32>
    %339 = arith.truncf %338 : vector<16x32xf32> to vector<16x32xbf16>
    %c1_90 = arith.constant 1 : index
    %c0_91 = arith.constant 0 : index
    %c0_92 = arith.constant 0 : index
    %340 = vector.load %arg5[%c1_90, %c0_91, %c0_92] : memref<2x32x64xbf16, #tpu.memory_space<vmem>>, vector<1x32x64xbf16>
    %341 = vector.shape_cast %340 : vector<1x32x64xbf16> to vector<32x64xbf16>
    %cst_93 = arith.constant dense<0.000000e+00> : vector<16x64xf32>
    %342 = tpu.matmul %339, %341, %cst_93 {dimension_numbers = #tpu.dot_dimension_numbers<[1], [0], [0], [1], [0, 0, 1, 1], [], []>} : vector<16x32xbf16>, vector<32x64xbf16>, vector<16x64xf32> -> vector<16x64xf32>
    %343 = vector.shape_cast %215 : vector<64xf32> to vector<1x64xf32>
    %344 = vector.broadcast %343 : vector<1x64xf32> to vector<16x64xf32>
    %345 = arith.addf %342, %344 : vector<16x64xf32>
    %cst_94 = arith.constant 5.000000e-01 : f32
    %346 = vector.broadcast %cst_94 : f32 to vector<16x64xf32>
    %347 = arith.mulf %346, %345 : vector<16x64xf32>
    %cst_95 = arith.constant 0.707106769 : f32
    %348 = vector.broadcast %cst_95 : f32 to vector<16x64xf32>
    %349 = arith.mulf %345, %348 : vector<16x64xf32>
    %cst_96 = arith.constant 0.000000e+00 : f32
    %350 = vector.broadcast %cst_96 : f32 to vector<16x64xf32>
    %351 = arith.cmpf oge, %349, %350 : vector<16x64xf32>
    %cst_97 = arith.constant 1.000000e+00 : f32
    %cst_98 = arith.constant -1.000000e+00 : f32
    %352 = vector.broadcast %cst_97 : f32 to vector<16x64xf32>
    %353 = vector.broadcast %cst_98 : f32 to vector<16x64xf32>
    %354 = arith.select %351, %352, %353 : vector<16x64xi1>, vector<16x64xf32>
    %355 = math.absf %349 : vector<16x64xf32>
    %cst_99 = arith.constant 0.327591091 : f32
    %356 = vector.broadcast %cst_99 : f32 to vector<16x64xf32>
    %357 = arith.mulf %356, %355 : vector<16x64xf32>
    %cst_100 = arith.constant 1.000000e+00 : f32
    %358 = vector.broadcast %cst_100 : f32 to vector<16x64xf32>
    %359 = arith.addf %358, %357 : vector<16x64xf32>
    %cst_101 = arith.constant 1.000000e+00 : f32
    %360 = vector.broadcast %cst_101 : f32 to vector<16x64xf32>
    %361 = arith.divf %360, %359 : vector<16x64xf32>
    %cst_102 = arith.constant 1.06140542 : f32
    %362 = vector.broadcast %cst_102 : f32 to vector<16x64xf32>
    %363 = arith.mulf %362, %361 : vector<16x64xf32>
    %cst_103 = arith.constant -1.45315206 : f32
    %364 = vector.broadcast %cst_103 : f32 to vector<16x64xf32>
    %365 = arith.addf %363, %364 : vector<16x64xf32>
    %366 = arith.mulf %365, %361 : vector<16x64xf32>
    %cst_104 = arith.constant 1.42141378 : f32
    %367 = vector.broadcast %cst_104 : f32 to vector<16x64xf32>
    %368 = arith.addf %366, %367 : vector<16x64xf32>
    %369 = arith.mulf %368, %361 : vector<16x64xf32>
    %cst_105 = arith.constant -0.284496725 : f32
    %370 = vector.broadcast %cst_105 : f32 to vector<16x64xf32>
    %371 = arith.addf %369, %370 : vector<16x64xf32>
    %372 = arith.mulf %371, %361 : vector<16x64xf32>
    %cst_106 = arith.constant 0.254829586 : f32
    %373 = vector.broadcast %cst_106 : f32 to vector<16x64xf32>
    %374 = arith.addf %372, %373 : vector<16x64xf32>
    %375 = arith.mulf %374, %361 : vector<16x64xf32>
    %cst_107 = arith.constant 0.000000e+00 : f32
    %376 = vector.broadcast %cst_107 : f32 to vector<16x64xf32>
    %377 = arith.subf %376, %355 : vector<16x64xf32>
    %378 = arith.mulf %377, %355 : vector<16x64xf32>
    %379 = math.exp %378 : vector<16x64xf32>
    %380 = arith.mulf %375, %379 : vector<16x64xf32>
    %cst_108 = arith.constant 1.000000e+00 : f32
    %381 = vector.broadcast %cst_108 : f32 to vector<16x64xf32>
    %382 = arith.subf %381, %380 : vector<16x64xf32>
    %383 = arith.mulf %354, %382 : vector<16x64xf32>
    %cst_109 = arith.constant 1.000000e+00 : f32
    %384 = vector.broadcast %cst_109 : f32 to vector<16x64xf32>
    %385 = arith.addf %384, %383 : vector<16x64xf32>
    %386 = arith.mulf %347, %385 : vector<16x64xf32>
    %387 = arith.truncf %386 : vector<16x64xf32> to vector<16x64xbf16>
    %c1_110 = arith.constant 1 : index
    %c0_111 = arith.constant 0 : index
    %c0_112 = arith.constant 0 : index
    %388 = vector.load %arg6[%c1_110, %c0_111, %c0_112] : memref<2x64x32xbf16, #tpu.memory_space<vmem>>, vector<1x64x32xbf16>
    %389 = vector.shape_cast %388 : vector<1x64x32xbf16> to vector<64x32xbf16>
    %cst_113 = arith.constant dense<0.000000e+00> : vector<16x32xf32>
    %390 = tpu.matmul %387, %389, %cst_113 {dimension_numbers = #tpu.dot_dimension_numbers<[1], [0], [0], [1], [0, 0, 1, 1], [], []>} : vector<16x64xbf16>, vector<64x32xbf16>, vector<16x32xf32> -> vector<16x32xf32>
    %391 = vector.shape_cast %216 : vector<32xf32> to vector<1x32xf32>
    %392 = vector.broadcast %391 : vector<1x32xf32> to vector<16x32xf32>
    %393 = arith.addf %390, %392 : vector<16x32xf32>
    %394 = arith.addf %314, %393 : vector<16x32xf32>
    %c1_114 = arith.constant 1 : index
    %c0_115 = arith.constant 0 : index
    %395 = vector.load %arg8[%c1_114, %c0_115] : memref<3x32xf32, #tpu.memory_space<vmem>>, vector<1x32xf32>
    %396 = vector.shape_cast %395 : vector<1x32xf32> to vector<32xf32>
    %c2 = arith.constant 2 : index
    %c0_116 = arith.constant 0 : index
    %397 = vector.load %arg8[%c2, %c0_116] : memref<3x32xf32, #tpu.memory_space<vmem>>, vector<1x32xf32>
    %398 = vector.shape_cast %397 : vector<1x32xf32> to vector<32xf32>
    %cst_117 = arith.constant dense<0.000000e+00> : vector<16xf32>
    %399 = vector.multi_reduction <add>, %394, %cst_117 [1] : vector<16x32xf32> to vector<16xf32>
    %400 = vector.shape_cast %399 : vector<16xf32> to vector<16x1xf32>
    %cst_118 = arith.constant 3.200000e+01 : f32
    %401 = vector.broadcast %cst_118 : f32 to vector<16x1xf32>
    %402 = arith.divf %400, %401 : vector<16x1xf32>
    %403 = vector.broadcast %402 : vector<16x1xf32> to vector<16x32xf32>
    %404 = arith.subf %394, %403 : vector<16x32xf32>
    %405 = arith.mulf %404, %404 : vector<16x32xf32>
    %cst_119 = arith.constant dense<0.000000e+00> : vector<16xf32>
    %406 = vector.multi_reduction <add>, %405, %cst_119 [1] : vector<16x32xf32> to vector<16xf32>
    %407 = vector.shape_cast %406 : vector<16xf32> to vector<16x1xf32>
    %cst_120 = arith.constant 3.200000e+01 : f32
    %408 = vector.broadcast %cst_120 : f32 to vector<16x1xf32>
    %409 = arith.divf %407, %408 : vector<16x1xf32>
    %410 = vector.broadcast %402 : vector<16x1xf32> to vector<16x32xf32>
    %411 = arith.subf %394, %410 : vector<16x32xf32>
    %cst_121 = arith.constant 9.99999974E-6 : f32
    %412 = vector.broadcast %cst_121 : f32 to vector<16x1xf32>
    %413 = arith.addf %409, %412 : vector<16x1xf32>
    %414 = math.rsqrt %413 : vector<16x1xf32>
    %415 = vector.broadcast %414 : vector<16x1xf32> to vector<16x32xf32>
    %416 = arith.mulf %411, %415 : vector<16x32xf32>
    %417 = vector.shape_cast %396 : vector<32xf32> to vector<1x32xf32>
    %418 = vector.broadcast %417 : vector<1x32xf32> to vector<16x32xf32>
    %419 = arith.mulf %416, %418 : vector<16x32xf32>
    %420 = vector.shape_cast %398 : vector<32xf32> to vector<1x32xf32>
    %421 = vector.broadcast %420 : vector<1x32xf32> to vector<16x32xf32>
    %422 = arith.addf %419, %421 : vector<16x32xf32>
    %c0_122 = arith.constant 0 : index
    %c0_123 = arith.constant 0 : index
    %423 = vector.load %arg9[%c0_122, %c0_123] : memref<16x32xf32, #tpu.memory_space<vmem>>, vector<16x32xf32>
    tpu.vector_store %arg9[%c0_122, %c0_123], %422 {strides = array<i32>} : memref<16x32xf32, #tpu.memory_space<vmem>>, vector<16x32xf32>,
    return
  }
}

</mosaic_0001>

<llo_original>
// kernel: eq.1
$region0: #{eq.1}
  %s0 = inlined_call_operand.vmem [shape: s32[2,8], index: 0, kind: input, shape index: {}]
  %s1 = inlined_call_operand.vmem [shape: s32[16], index: 1, kind: output, shape index: {}]
  $region1: #{eq.1} parent=0
    #allocation0 [shape = 'u8[4096]{0}', space=vmem, size = 0x1000, scoped, tag = 'scoped mem for output reshape']
    #allocation1 [shape = 'u8[4096]{0}', space=vmem, size = 0x1000, scoped, tag = 'scoped mem for input reshape']
    %s3 = sshll.u32 1, 2
    %s4 = ssub.s32 %s3, 1
    %v5 = vld [vmem:[%s0] sm:%s4]
    %6 = vst [vmem:[#allocation1] sm:%s4] %v5
    %v7 = vld [vmem:[#allocation1] sm:$0x1]
    %vm8 = vcmask 64512
    %9 = vst.msk [vmem:[#allocation0] sm:$0x1] %vm8, %v7
    %s10 = scalar_lea.vmem [#allocation1], 1
    %v11 = vld [vmem:[%s10] sm:$0x1]
    %12 = vrot.lane.b32.xlu0 %v11, 8
    %v13 = vpop.permute.xlu0 %12
    %vm14 = vcmask 130112
    %15 = vst.msk [vmem:[#allocation0] sm:$0x1] %vm14, %v13
    %s17 = sshll.u32 1, 1
    %s18 = ssub.s32 %s17, 1
    %v20 = vld [vmem:[#allocation0] sm:%s18]
    %s21 = sshll.u32 1, 1
    %s22 = ssub.s32 %s21, 1
    %23 = vst [vmem:[%s1] sm:%s22] %v20

// kernel: jet_backbone_forward.1
$region0: #{jet_backbone_forward.1}
  #allocation0 [shape = 'u32[]', space=smem, size = 0x4, offset = 0x4, fixed_abs, tag = 'smem constant byte address 0x4 - core index']
  #allocation1 [shape = 'u32[144,128]{1,0:T(1,128)}', space=vmem, size = 0x12000, scoped, tag = 'internal scratch']
  %s0 = inlined_call_operand.vmem [shape: f32[16,12], index: 0, kind: input, shape index: {}]
  %s1 = inlined_call_operand.vmem [shape: f32[4,1,8], index: 1, kind: input, shape index: {}]
  %s2 = inlined_call_operand.vmem [shape: bf16[12,32], index: 2, kind: input, shape index: {}]
  %s3 = inlined_call_operand.vmem [shape: bf16[2,3,32,32], index: 3, kind: input, shape index: {}]
  %s4 = inlined_call_operand.vmem [shape: bf16[2,32,32], index: 4, kind: input, shape index: {}]
  %s5 = inlined_call_operand.vmem [shape: bf16[2,32,64], index: 5, kind: input, shape index: {}]
  %s6 = inlined_call_operand.vmem [shape: bf16[2,64,32], index: 6, kind: input, shape index: {}]
  %s7 = inlined_call_operand.hbm [shape: f32[2,352], index: 7, kind: input, shape index: {}]
  %s8 = inlined_call_operand.hbm [shape: f32[3,32], index: 8, kind: input, shape index: {}]
  %s9 = inlined_call_operand.hbm [shape: f32[16,32], index: 9, kind: output, shape index: {}]
  %s10 = sld [smem:[#allocation0]]
  $region54: #{jet_backbone_forward.1} parent=0
    _
  %s12 = ssub.s32 1, %s10
  %s13 = scalar_select 0, %s12, %s10
  $region1: #{jet_backbone_forward.1} parent=0
    #allocation2 [shape = 'u8[3072]{0}', space=vmem, size = 0xc00, scoped, tag = 'input window, operand 7, single buffered']
    #allocation3 [shape = 's32[1]{0}', space=sflag, size = 0x4, scoped, tag = 'scoped memory for jet_backbone_forward.1']
    #allocation4 [shape = 's32[1]{0}', space=sflag, size = 0x4, scoped, tag = 'scoped memory for jet_backbone_forward.1']
    #allocation5 [shape = 'u8[2048]{0}', space=vmem, size = 0x800, scoped, tag = 'input window, operand 8, single buffered']
    #allocation6 [shape = 's32[1]{0}', space=sflag, size = 0x4, scoped, tag = 'scoped memory for jet_backbone_forward.1']
    #allocation7 [shape = 'u8[8192]{0}', space=vmem, size = 0x2000, scoped, tag = 'output window, operand 0, single buffered']
    %14 = vsyncpa [#allocation3], 0
    %15 = vsyncpa [#allocation6], 0
    %16 = vsyncpa [#allocation4], 0
    // Predicated region
    $region2: #{jet_backbone_forward.1} parent=1 // pred_check
      _
    $region3: #{jet_backbone_forward.1} parent=1 // pred_check_branch
      %18 = sbr.rel (0) target = $region5
    $region4: #{jet_backbone_forward.1} parent=1 // pred_region
      _
    $region5: #{jet_backbone_forward.1} parent=1 // pred_fallthru
      _
    // Predicated region
    $region6: #{jet_backbone_forward.1} parent=1 // pred_check
      _
    $region7: #{jet_backbone_forward.1} parent=1 // pred_check_branch
      %20 = sbr.rel (0) target = $region9
    $region8: #{jet_backbone_forward.1} parent=1 // pred_region
      _
    $region9: #{jet_backbone_forward.1} parent=1 // pred_fallthru
      _
    // Predicated region
    $region10: #{jet_backbone_forward.1} parent=1 // pred_check
      _
    $region11: #{jet_backbone_forward.1} parent=1 // pred_check_branch
      %22 = sbr.rel (0) target = $region13
    $region12: #{jet_backbone_forward.1} parent=1 // pred_region
      _
    $region13: #{jet_backbone_forward.1} parent=1 // pred_fallthru
      _
    // Predicated region
    $region14: #{jet_backbone_forward.1} parent=1 // pred_check
      _
    $region15: #{jet_backbone_forward.1} parent=1 // pred_check_branch
      %24 = sbr.rel (0) target = $region17
    $region16: #{jet_backbone_forward.1} parent=1 // pred_region
      _
    $region17: #{jet_backbone_forward.1} parent=1 // pred_fallthru
      _
    // Predicated region
    $region18: #{jet_backbone_forward.1} parent=1 // pred_check
      _
    $region19: #{jet_backbone_forward.1} parent=1 // pred_check_branch
      %26 = sbr.rel (0) target = $region21
    $region20: #{jet_backbone_forward.1} parent=1 // pred_region
      _
    $region21: #{jet_backbone_forward.1} parent=1 // pred_fallthru
      _
    // Predicated region
    $region22: #{jet_backbone_forward.1} parent=1 // pred_check
      _
    $region23: #{jet_backbone_forward.1} parent=1 // pred_check_branch
      %28 = sbr.rel (0) target = $region25
    $region24: #{jet_backbone_forward.1} parent=1 // pred_region
      _
    $region25: #{jet_backbone_forward.1} parent=1 // pred_fallthru
      _
    // Predicated region
    $region26: #{jet_backbone_forward.1} parent=1 // pred_check
      _
    $region27: #{jet_backbone_forward.1} parent=1 // pred_check_branch
      %30 = sbr.rel (0) target = $region29
    $region28: #{jet_backbone_forward.1} parent=1 // pred_region
      _
    $region29: #{jet_backbone_forward.1} parent=1 // pred_fallthru
      _
    // Predicated region
    $region30: #{jet_backbone_forward.1} parent=1 // pred_check
      _
    $region31: #{jet_backbone_forward.1} parent=1 // pred_check_branch
      %32 = sbr.rel (0) target = $region33
    $region32: #{jet_backbone_forward.1} parent=1 // pred_region
      %s34 = ssub.s32 96, 96
      %35 = vsyncadd [#allocation3], %s34
      %s37 = sshll.u32 [#allocation2], 4
      %s38 = int_to_ptr.vmem [resolvable:$true] %s37
      %40 = dma.hbm_to_vmem [thread:$0]  %s7, 96, %s38, [#allocation3]
    $region33: #{jet_backbone_forward.1} parent=1 // pred_fallthru
      _
    // Predicated region
    $region34: #{jet_backbone_forward.1} parent=1 // pred_check
      _
    $region35: #{jet_backbone_forward.1} parent=1 // pred_check_branch
      %42 = sbr.rel (0) target = $region37
    $region36: #{jet_backbone_forward.1} parent=1 // pred_region
      %s44 = ssub.s32 64, 64
      %45 = vsyncadd [#allocation6], %s44
      %s47 = sshll.u32 [#allocation5], 4
      %s48 = int_to_ptr.vmem [resolvable:$true] %s47
      %50 = dma.hbm_to_vmem [thread:$0]  %s8, 64, %s48, [#allocation6]
    $region37: #{jet_backbone_forward.1} parent=1 // pred_fallthru
      _
    // Predicated region
    $region38: #{jet_backbone_forward.1} parent=1 // pred_check
      _
    $region39: #{jet_backbone_forward.1} parent=1 // pred_check_branch
      %52 = sbr.rel (0) target = $region41
    $region40: #{jet_backbone_forward.1} parent=1 // pred_region
      %53 = dma.done [#allocation3], 96
    $region41: #{jet_backbone_forward.1} parent=1 // pred_fallthru
      _
    // Predicated region
    $region42: #{jet_backbone_forward.1} parent=1 // pred_check
      _
    $region43: #{jet_backbone_forward.1} parent=1 // pred_check_branch
      %55 = sbr.rel (0) target = $region45
    $region44: #{jet_backbone_forward.1} parent=1 // pred_region
      %56 = dma.done [#allocation6], 64
    $region45: #{jet_backbone_forward.1} parent=1 // pred_fallthru
      _
    %v58 = vld [vmem:[%s0] sm:$0xff]
    %v59 = vld [vmem:[%s0 + $0x8] sm:$0xff]
    %v60 = vpack.c.bf16 %v59, %v58
    %v61 = vld [vmem:[%s2] sm:$0xf]
    %v62 = vld [vmem:[%s2 + $0x4] sm:$0x3]
    %v63 = vld [vmem:[#allocation5] sm:$0x1]
    %v64 = vlaneseq
    %v65 = vshrl.u32 %v64, 7
    %v66 = vsub.s32 0, %v65
    %v67 = vrot.slane %v63, %v66
    %v70 = vunpack.c.l.b16 %v61
    %v71 = vunpack.c.l.b16 %v62
    %v72 = vpack.c.b16 %v71, %v70
    %vm73 = vcmask 97280
    %v75 = vsel %vm73, %v60, 0
    %vm77 = vcmask 1045504
    %v79 = vsel %vm77, %v72, 0
    %81 = vmatprep.subr.bf16.mxu0 0
    %82 = vmatpush1.bf16.msra.mxu0 0
    %83 = vmatprep.subr.bf16.mxu0 0
    %84 = vmatpush1.bf16.msra.mxu0 0
    %85 = vmatprep.subr.bf16.mxu0 0
    %86 = vmatpush1.bf16.msra.mxu0 0
    %87 = vmatprep.subr.bf16.mxu0 0
    %88 = vmatpush1.bf16.msra.mxu0 0
    %89 = vmatprep.subr.bf16.mxu0 0
    %90 = vmatpush1.bf16.msra.mxu0 0
    %91 = vmatprep.subr.bf16.mxu0 0
    %92 = vmatpush1.bf16.msra.mxu0 0
    %93 = vmatprep.subr.bf16.mxu0 0
    %94 = vmatpush1.bf16.msra.mxu0 0
    %95 = vmatprep.subr.bf16.mxu0 0
    %96 = vmatpush1.bf16.msra.mxu0 %v79
    %97 = vmatprep.subr.bf16.mxu0 0
    %98 = vmatpush2.bf16.msra.mxu0 0
    %99 = vmatprep.subr.bf16.mxu0 0
    %100 = vmatpush2.bf16.msra.mxu0 0
    %101 = vmatprep.subr.bf16.mxu0 0
    %102 = vmatpush2.bf16.msra.mxu0 0
    %103 = vmatprep.subr.bf16.mxu0 0
    %104 = vmatpush2.bf16.msra.mxu0 0
    %105 = vmatprep.subr.bf16.mxu0 0
    %106 = vmatpush2.bf16.msra.mxu0 0
    %107 = vmatprep.subr.bf16.mxu0 0
    %108 = vmatpush2.bf16.msra.mxu0 0
    %109 = vmatprep.subr.bf16.mxu0 0
    %110 = vmatpush2.bf16.msra.mxu0 0
    %111 = vmatprep.subr.bf16.mxu0 0
    %112 = vmatpush2.bf16.msra.mxu0 0
    %113 = vmatprep.mubr.bf16.mxu0 0
    %114 = vmatmul.mubr.bf16.gmra.mxu0 %v75
    %v115 = vpop.f32.mrf.mxu0
    %v116 = vadd.f32 %v67, %v115
    %v117 = vpop.f32.mrf.mxu0
    %v118 = vpop.f32.mrf.mxu0
    %v119 = vadd.f32 %v67, %v118
    %v120 = vpop.f32.mrf.mxu0
    %121 = vdwg.mxu0
    %v122 = vld [vmem:[%s1] sm:$0x1]
    %v123 = vld [vmem:[%s1 + $0x1] sm:$0x1]
    %v124 = vld [vmem:[%s1 + $0x2] sm:$0x1]
    %v125 = vld [vmem:[%s1 + $0x3] sm:$0x1]
    %vm126 = vcmp.gt.f32.partialorder %v122, 0.5
    %vm127 = vcmp.gt.f32.partialorder %v123, 0.5
    %vm128 = vcmp.gt.f32.partialorder %v124, 0.5
    %vm129 = vcmp.gt.f32.partialorder %v125, 0.5
    %v130 = vsel %vm126, 0.0, -1e+09
    %v131 = vsel %vm127, 0.0, -1e+09
    %v132 = vsel %vm128, 0.0, -1e+09
    %v133 = vsel %vm129, 0.0, -1e+09
    %v134 = vld [vmem:[#allocation2] ss:$2 sm:$0x7]
    %v135 = vld [vmem:[%s3] sm:$0xf]
    %v136 = vld [vmem:[%s3 + $0x4] sm:$0xf]
    %v137 = vld [vmem:[%s3 + $0x8] sm:$0xf]
    %v138 = vld [vmem:[%s3 + $0xc] sm:$0xf]
    %v139 = vld [vmem:[%s3 + $0x10] sm:$0xf]
    %v140 = vld [vmem:[%s3 + $0x14] sm:$0xf]
    %v141 = vld [vmem:[%s3 + $0x18] sm:$0xf]
    %v142 = vld [vmem:[%s3 + $0x1c] sm:$0xf]
    %v143 = vld [vmem:[%s3 + $0x20] sm:$0xf]
    %v144 = vld [vmem:[%s3 + $0x24] sm:$0xf]
    %v145 = vld [vmem:[%s3 + $0x28] sm:$0xf]
    %v146 = vld [vmem:[%s3 + $0x2c] sm:$0xf]
    %vm147 = vcmask 261120
    %v148 = vsel %vm147, %v116, 0.0
    %149 = vadd.xlane.f32.xlu0 %v148
    %v150 = vpop.xlane.xlu0 %149
    %v151 = vsel %vm147, %v119, 0.0
    %152 = vadd.xlane.f32.xlu0 %v151
    %v153 = vpop.xlane.xlu0 %152
    %v154 = vrcp.pop 32.0
    %v155 = vmul.f32 %v150, %v154
    %v156 = vmul.f32 %v153, %v154
    %v157 = vsub.f32 %v116, %v155
    %v158 = vsub.f32 %v119, %v156
    %v159 = vmul.f32 %v157, %v157
    %v160 = vmul.f32 %v158, %v158
    %v161 = vsel %vm147, %v159, 0.0
    %162 = vadd.xlane.f32.xlu0 %v161
    %v163 = vpop.xlane.xlu0 %162
    %v164 = vsel %vm147, %v160, 0.0
    %165 = vadd.xlane.f32.xlu0 %v164
    %v166 = vpop.xlane.xlu0 %165
    %v167 = vmul.f32 %v163, %v154
    %v168 = vmul.f32 %v166, %v154
    %v169 = vadd.f32 %v167, 1e-05
    %v170 = vadd.f32 %v168, 1e-05
    %v171 = vrsqrt.pop %v169
    %v172 = vrsqrt.pop %v170
    %v173 = vmul.f32 %v157, %v171
    %v174 = vmul.f32 %v158, %v172
    %v176 = vlaneseq
    %v177 = vshrl.u32 %v176, 7
    %v178 = vsub.s32 0, %v177
    %v179 = vrot.slane %v134, %v178
    %v181 = vmul.f32 %v173, %v179
    %v182 = vmul.f32 %v174, %v179
    %183 = vrot.lane.b32.xlu0 %v179, 96
    %v184 = vpop.permute.xlu0 %183
    %v186 = vadd.f32 %v181, %v184
    %v187 = vadd.f32 %v182, %v184
    %v188 = vpack.c.bf16 %v187, %v186
    %v193 = vunpack.c.l.b16 %v135
    %v194 = vunpack.c.l.b16 %v136
    %v195 = vunpack.c.l.b16 %v137
    %v196 = vunpack.c.l.b16 %v138
    %v197 = vpack.c.b16 %v194, %v193
    %v198 = vpack.c.b16 %v196, %v195
    %201 = vrot.lane.b32.xlu0 %v179, 64
    %v202 = vpop.permute.xlu0 %201
    %v205 = vsel %vm147, %v188, 0
    %207 = vmatprep.subr.bf16.mxu0 0
    %208 = vmatpush1.bf16.msra.mxu0 0
    %209 = vmatprep.subr.bf16.mxu0 0
    %210 = vmatpush1.bf16.msra.mxu0 0
    %211 = vmatprep.subr.bf16.mxu0 0
    %212 = vmatpush1.bf16.msra.mxu0 0
    %213 = vmatprep.subr.bf16.mxu0 0
    %214 = vmatpush1.bf16.msra.mxu0 0
    %215 = vmatprep.subr.bf16.mxu0 0
    %216 = vmatpush1.bf16.msra.mxu0 0
    %217 = vmatprep.subr.bf16.mxu0 0
    %218 = vmatpush1.bf16.msra.mxu0 0
    %219 = vmatprep.subr.bf16.mxu0 0
    %220 = vmatpush1.bf16.msra.mxu0 %v198
    %221 = vmatprep.subr.bf16.mxu0 0
    %222 = vmatpush1.bf16.msra.mxu0 %v197
    %223 = vmatprep.subr.bf16.mxu0 0
    %224 = vmatpush2.bf16.msra.mxu0 0
    %225 = vmatprep.subr.bf16.mxu0 0
    %226 = vmatpush2.bf16.msra.mxu0 0
    %227 = vmatprep.subr.bf16.mxu0 0
    %228 = vmatpush2.bf16.msra.mxu0 0
    %229 = vmatprep.subr.bf16.mxu0 0
    %230 = vmatpush2.bf16.msra.mxu0 0
    %231 = vmatprep.subr.bf16.mxu0 0
    %232 = vmatpush2.bf16.msra.mxu0 0
    %233 = vmatprep.subr.bf16.mxu0 0
    %234 = vmatpush2.bf16.msra.mxu0 0
    %235 = vmatprep.subr.bf16.mxu0 0
    %236 = vmatpush2.bf16.msra.mxu0 0
    %237 = vmatprep.subr.bf16.mxu0 0
    %238 = vmatpush2.bf16.msra.mxu0 0
    %239 = vmatprep.mubr.bf16.mxu0 0
    %240 = vmatmul.mubr.bf16.gmra.mxu0 %v205
    %v241 = vpop.f32.mrf.mxu0
    %v242 = vadd.f32 %v202, %v241
    %v243 = vpop.f32.mrf.mxu0
    %v244 = vpop.f32.mrf.mxu0
    %v245 = vadd.f32 %v202, %v244
    %v246 = vpop.f32.mrf.mxu0
    %247 = vdwg.mxu0
    %v252 = vunpack.c.l.b16 %v139
    %v253 = vunpack.c.l.b16 %v140
    %v254 = vunpack.c.l.b16 %v141
    %v255 = vunpack.c.l.b16 %v142
    %v256 = vpack.c.b16 %v253, %v252
    %v257 = vpack.c.b16 %v255, %v254
    %260 = vrot.lane.b32.xlu0 %v179, 32
    %v261 = vpop.permute.xlu0 %260
    %263 = vmatprep.subr.bf16.mxu0 0
    %264 = vmatpush1.bf16.msra.mxu0 0
    %265 = vmatprep.subr.bf16.mxu0 0
    %266 = vmatpush1.bf16.msra.mxu0 0
    %267 = vmatprep.subr.bf16.mxu0 0
    %268 = vmatpush1.bf16.msra.mxu0 0
    %269 = vmatprep.subr.bf16.mxu0 0
    %270 = vmatpush1.bf16.msra.mxu0 0
    %271 = vmatprep.subr.bf16.mxu0 0
    %272 = vmatpush1.bf16.msra.mxu0 0
    %273 = vmatprep.subr.bf16.mxu0 0
    %274 = vmatpush1.bf16.msra.mxu0 0
    %275 = vmatprep.subr.bf16.mxu0 0
    %276 = vmatpush1.bf16.msra.mxu0 %v257
    %277 = vmatprep.subr.bf16.mxu0 0
    %278 = vmatpush1.bf16.msra.mxu0 %v256
    %279 = vmatprep.subr.bf16.mxu0 0
    %280 = vmatpush2.bf16.msra.mxu0 0
    %281 = vmatprep.subr.bf16.mxu0 0
    %282 = vmatpush2.bf16.msra.mxu0 0
    %283 = vmatprep.subr.bf16.mxu0 0
    %284 = vmatpush2.bf16.msra.mxu0 0
    %285 = vmatprep.subr.bf16.mxu0 0
    %286 = vmatpush2.bf16.msra.mxu0 0
    %287 = vmatprep.subr.bf16.mxu0 0
    %288 = vmatpush2.bf16.msra.mxu0 0
    %289 = vmatprep.subr.bf16.mxu0 0
    %290 = vmatpush2.bf16.msra.mxu0 0
    %291 = vmatprep.subr.bf16.mxu0 0
    %292 = vmatpush2.bf16.msra.mxu0 0
    %293 = vmatprep.subr.bf16.mxu0 0
    %294 = vmatpush2.bf16.msra.mxu0 0
    %295 = vmatprep.mubr.bf16.mxu0 0
    %296 = vmatmul.mubr.bf16.gmra.mxu0 %v205
    %v297 = vpop.f32.mrf.mxu0
    %v298 = vadd.f32 %v261, %v297
    %v299 = vpop.f32.mrf.mxu0
    %v300 = vpop.f32.mrf.mxu0
    %v301 = vadd.f32 %v261, %v300
    %v302 = vpop.f32.mrf.mxu0
    %303 = vdwg.mxu0
    %v304 = vrot.slane %v134, 1
    %v305 = vlaneseq
    %v306 = vshrl.u32 %v305, 7
    %v307 = vsub.s32 0, %v306
    %v308 = vrot.slane %v304, %v307
    %v314 = vunpack.c.l.b16 %v143
    %v315 = vunpack.c.l.b16 %v144
    %v316 = vunpack.c.l.b16 %v145
    %v317 = vunpack.c.l.b16 %v146
    %v318 = vpack.c.b16 %v315, %v314
    %v319 = vpack.c.b16 %v317, %v316
    %322 = vmatprep.subr.bf16.mxu0 0
    %323 = vmatpush1.bf16.msra.mxu0 0
    %324 = vmatprep.subr.bf16.mxu0 0
    %325 = vmatpush1.bf16.msra.mxu0 0
    %326 = vmatprep.subr.bf16.mxu0 0
    %327 = vmatpush1.bf16.msra.mxu0 0
    %328 = vmatprep.subr.bf16.mxu0 0
    %329 = vmatpush1.bf16.msra.mxu0 0
    %330 = vmatprep.subr.bf16.mxu0 0
    %331 = vmatpush1.bf16.msra.mxu0 0
    %332 = vmatprep.subr.bf16.mxu0 0
    %333 = vmatpush1.bf16.msra.mxu0 0
    %334 = vmatprep.subr.bf16.mxu0 0
    %335 = vmatpush1.bf16.msra.mxu0 %v319
    %336 = vmatprep.subr.bf16.mxu0 0
    %337 = vmatpush1.bf16.msra.mxu0 %v318
    %338 = vmatprep.subr.bf16.mxu0 0
    %339 = vmatpush2.bf16.msra.mxu0 0
    %340 = vmatprep.subr.bf16.mxu0 0
    %341 = vmatpush2.bf16.msra.mxu0 0
    %342 = vmatprep.subr.bf16.mxu0 0
    %343 = vmatpush2.bf16.msra.mxu0 0
    %344 = vmatprep.subr.bf16.mxu0 0
    %345 = vmatpush2.bf16.msra.mxu0 0
    %346 = vmatprep.subr.bf16.mxu0 0
    %347 = vmatpush2.bf16.msra.mxu0 0
    %348 = vmatprep.subr.bf16.mxu0 0
    %349 = vmatpush2.bf16.msra.mxu0 0
    %350 = vmatprep.subr.bf16.mxu0 0
    %351 = vmatpush2.bf16.msra.mxu0 0
    %352 = vmatprep.subr.bf16.mxu0 0
    %353 = vmatpush2.bf16.msra.mxu0 0
    %354 = vmatprep.mubr.bf16.mxu0 0
    %355 = vmatmul.mubr.bf16.gmra.mxu0 %v205
    %v356 = vpop.f32.mrf.mxu0
    %v357 = vadd.f32 %v308, %v356
    %v358 = vpop.f32.mrf.mxu0
    %v359 = vpop.f32.mrf.mxu0
    %v360 = vadd.f32 %v308, %v359
    %v361 = vpop.f32.mrf.mxu0
    %362 = vdwg.mxu0
    %365 = vrot.lane.b32.xlu0 %v242, 112
    %v366 = vpop.permute.xlu0 %365
    %367 = vrot.lane.b32.xlu0 %v245, 112
    %v368 = vpop.permute.xlu0 %367
    %v371 = vpack.c.bf16 %v242, %v242
    %v372 = vpack.c.bf16 %v366, %v366
    %v373 = vpack.c.bf16 %v245, %v245
    %v374 = vpack.c.bf16 %v368, %v368
    %377 = vrot.lane.b32.xlu0 %v298, 112
    %v378 = vpop.permute.xlu0 %377
    %379 = vrot.lane.b32.xlu0 %v301, 112
    %v380 = vpop.permute.xlu0 %379
    %v383 = vpack.c.bf16 %v298, %v298
    %v384 = vpack.c.bf16 %v378, %v378
    %v385 = vpack.c.bf16 %v301, %v301
    %v386 = vpack.c.bf16 %v380, %v380
    %389 = vrot.lane.b32.xlu0 %v357, 112
    %v390 = vpop.permute.xlu0 %389
    %391 = vrot.lane.b32.xlu0 %v360, 112
    %v392 = vpop.permute.xlu0 %391
    %v395 = vpack.c.bf16 %v357, %v357
    %v396 = vpack.c.bf16 %v390, %v390
    %v397 = vpack.c.bf16 %v360, %v360
    %v398 = vpack.c.bf16 %v392, %v392
    %vm399 = vcmask 130048
    %v401 = vsel %vm399, %v371, 0
    %v404 = vsel %vm399, %v383, 0
    %406 = vmatprep.subr.bf16.mxu0 0
    %407 = vmatpush1.bf16.xpose.msra.mxu0 0
    %408 = vmatprep.subr.bf16.mxu0 0
    %409 = vmatpush1.bf16.xpose.msra.mxu0 0
    %410 = vmatprep.subr.bf16.mxu0 0
    %411 = vmatpush1.bf16.xpose.msra.mxu0 0
    %412 = vmatprep.subr.bf16.mxu0 0
    %413 = vmatpush1.bf16.xpose.msra.mxu0 0
    %414 = vmatprep.subr.bf16.mxu0 0
    %415 = vmatpush1.bf16.xpose.msra.mxu0 0
    %416 = vmatprep.subr.bf16.mxu0 0
    %417 = vmatpush1.bf16.xpose.msra.mxu0 0
    %418 = vmatprep.subr.bf16.mxu0 0
    %419 = vmatpush1.bf16.xpose.msra.mxu0 0
    %420 = vmatprep.subr.bf16.mxu0 0
    %421 = vmatpush1.bf16.xpose.msra.mxu0 %v404
    %422 = vmatprep.subr.bf16.mxu0 0
    %423 = vmatpush2.bf16.xpose.msra.mxu0 0
    %424 = vmatprep.subr.bf16.mxu0 0
    %425 = vmatpush2.bf16.xpose.msra.mxu0 0
    %426 = vmatprep.subr.bf16.mxu0 0
    %427 = vmatpush2.bf16.xpose.msra.mxu0 0
    %428 = vmatprep.subr.bf16.mxu0 0
    %429 = vmatpush2.bf16.xpose.msra.mxu0 0
    %430 = vmatprep.subr.bf16.mxu0 0
    %431 = vmatpush2.bf16.xpose.msra.mxu0 0
    %432 = vmatprep.subr.bf16.mxu0 0
    %433 = vmatpush2.bf16.xpose.msra.mxu0 0
    %434 = vmatprep.subr.bf16.mxu0 0
    %435 = vmatpush2.bf16.xpose.msra.mxu0 0
    %436 = vmatprep.subr.bf16.mxu0 0
    %437 = vmatpush2.bf16.xpose.msra.mxu0 0
    %438 = vmatprep.mubr.bf16.mxu0 0
    %439 = vmatmul.mubr.bf16.gmra.mxu0 %v401
    %v440 = vpop.f32.mrf.mxu0
    %v441 = vadd.f32 0.0, %v440
    %v442 = vpop.f32.mrf.mxu0
    %v443 = vpop.f32.mrf.mxu0
    %v444 = vpop.f32.mrf.mxu0
    %445 = vdwg.mxu0
    %v447 = vsel %vm399, %v372, 0
    %v450 = vsel %vm399, %v384, 0
    %452 = vmatprep.subr.bf16.mxu0 0
    %453 = vmatpush1.bf16.xpose.msra.mxu0 0
    %454 = vmatprep.subr.bf16.mxu0 0
    %455 = vmatpush1.bf16.xpose.msra.mxu0 0
    %456 = vmatprep.subr.bf16.mxu0 0
    %457 = vmatpush1.bf16.xpose.msra.mxu0 0
    %458 = vmatprep.subr.bf16.mxu0 0
    %459 = vmatpush1.bf16.xpose.msra.mxu0 0
    %460 = vmatprep.subr.bf16.mxu0 0
    %461 = vmatpush1.bf16.xpose.msra.mxu0 0
    %462 = vmatprep.subr.bf16.mxu0 0
    %463 = vmatpush1.bf16.xpose.msra.mxu0 0
    %464 = vmatprep.subr.bf16.mxu0 0
    %465 = vmatpush1.bf16.xpose.msra.mxu0 0
    %466 = vmatprep.subr.bf16.mxu0 0
    %467 = vmatpush1.bf16.xpose.msra.mxu0 %v450
    %468 = vmatprep.subr.bf16.mxu0 0
    %469 = vmatpush2.bf16.xpose.msra.mxu0 0
    %470 = vmatprep.subr.bf16.mxu0 0
    %471 = vmatpush2.bf16.xpose.msra.mxu0 0
    %472 = vmatprep.subr.bf16.mxu0 0
    %473 = vmatpush2.bf16.xpose.msra.mxu0 0
    %474 = vmatprep.subr.bf16.mxu0 0
    %475 = vmatpush2.bf16.xpose.msra.mxu0 0
    %476 = vmatprep.subr.bf16.mxu0 0
    %477 = vmatpush2.bf16.xpose.msra.mxu0 0
    %478 = vmatprep.subr.bf16.mxu0 0
    %479 = vmatpush2.bf16.xpose.msra.mxu0 0
    %480 = vmatprep.subr.bf16.mxu0 0
    %481 = vmatpush2.bf16.xpose.msra.mxu0 0
    %482 = vmatprep.subr.bf16.mxu0 0
    %483 = vmatpush2.bf16.xpose.msra.mxu0 0
    %484 = vmatprep.mubr.bf16.mxu0 0
    %485 = vmatmul.mubr.bf16.gmra.mxu0 %v447
    %v486 = vpop.f32.mrf.mxu0
    %v487 = vadd.f32 0.0, %v486
    %v488 = vpop.f32.mrf.mxu0
    %v489 = vpop.f32.mrf.mxu0
    %v490 = vpop.f32.mrf.mxu0
    %491 = vdwg.mxu0
    %v493 = vsel %vm399, %v373, 0
    %v496 = vsel %vm399, %v385, 0
    %498 = vmatprep.subr.bf16.mxu0 0
    %499 = vmatpush1.bf16.xpose.msra.mxu0 0
    %500 = vmatprep.subr.bf16.mxu0 0
    %501 = vmatpush1.bf16.xpose.msra.mxu0 0
    %502 = vmatprep.subr.bf16.mxu0 0
    %503 = vmatpush1.bf16.xpose.msra.mxu0 0
    %504 = vmatprep.subr.bf16.mxu0 0
    %505 = vmatpush1.bf16.xpose.msra.mxu0 0
    %506 = vmatprep.subr.bf16.mxu0 0
    %507 = vmatpush1.bf16.xpose.msra.mxu0 0
    %508 = vmatprep.subr.bf16.mxu0 0
    %509 = vmatpush1.bf16.xpose.msra.mxu0 0
    %510 = vmatprep.subr.bf16.mxu0 0
    %511 = vmatpush1.bf16.xpose.msra.mxu0 0
    %512 = vmatprep.subr.bf16.mxu0 0
    %513 = vmatpush1.bf16.xpose.msra.mxu0 %v496
    %514 = vmatprep.subr.bf16.mxu0 0
    %515 = vmatpush2.bf16.xpose.msra.mxu0 0
    %516 = vmatprep.subr.bf16.mxu0 0
    %517 = vmatpush2.bf16.xpose.msra.mxu0 0
    %518 = vmatprep.subr.bf16.mxu0 0
    %519 = vmatpush2.bf16.xpose.msra.mxu0 0
    %520 = vmatprep.subr.bf16.mxu0 0
    %521 = vmatpush2.bf16.xpose.msra.mxu0 0
    %522 = vmatprep.subr.bf16.mxu0 0
    %523 = vmatpush2.bf16.xpose.msra.mxu0 0
    %524 = vmatprep.subr.bf16.mxu0 0
    %525 = vmatpush2.bf16.xpose.msra.mxu0 0
    %526 = vmatprep.subr.bf16.mxu0 0
    %527 = vmatpush2.bf16.xpose.msra.mxu0 0
    %528 = vmatprep.subr.bf16.mxu0 0
    %529 = vmatpush2.bf16.xpose.msra.mxu0 0
    %530 = vmatprep.mubr.bf16.mxu0 0
    %531 = vmatmul.mubr.bf16.gmra.mxu0 %v493
    %v532 = vpop.f32.mrf.mxu0
    %v533 = vadd.f32 0.0, %v532
    %v534 = vpop.f32.mrf.mxu0
    %v535 = vpop.f32.mrf.mxu0
    %v536 = vpop.f32.mrf.mxu0
    %537 = vdwg.mxu0
    %v539 = vsel %vm399, %v374, 0
    %v542 = vsel %vm399, %v386, 0
    %544 = vmatprep.subr.bf16.mxu0 0
    %545 = vmatpush1.bf16.xpose.msra.mxu0 0
    %546 = vmatprep.subr.bf16.mxu0 0
    %547 = vmatpush1.bf16.xpose.msra.mxu0 0
    %548 = vmatprep.subr.bf16.mxu0 0
    %549 = vmatpush1.bf16.xpose.msra.mxu0 0
    %550 = vmatprep.subr.bf16.mxu0 0
    %551 = vmatpush1.bf16.xpose.msra.mxu0 0
    %552 = vmatprep.subr.bf16.mxu0 0
    %553 = vmatpush1.bf16.xpose.msra.mxu0 0
    %554 = vmatprep.subr.bf16.mxu0 0
    %555 = vmatpush1.bf16.xpose.msra.mxu0 0
    %556 = vmatprep.subr.bf16.mxu0 0
    %557 = vmatpush1.bf16.xpose.msra.mxu0 0
    %558 = vmatprep.subr.bf16.mxu0 0
    %559 = vmatpush1.bf16.xpose.msra.mxu0 %v542
    %560 = vmatprep.subr.bf16.mxu0 0
    %561 = vmatpush2.bf16.xpose.msra.mxu0 0
    %562 = vmatprep.subr.bf16.mxu0 0
    %563 = vmatpush2.bf16.xpose.msra.mxu0 0
    %564 = vmatprep.subr.bf16.mxu0 0
    %565 = vmatpush2.bf16.xpose.msra.mxu0 0
    %566 = vmatprep.subr.bf16.mxu0 0
    %567 = vmatpush2.bf16.xpose.msra.mxu0 0
    %568 = vmatprep.subr.bf16.mxu0 0
    %569 = vmatpush2.bf16.xpose.msra.mxu0 0
    %570 = vmatprep.subr.bf16.mxu0 0
    %571 = vmatpush2.bf16.xpose.msra.mxu0 0
    %572 = vmatprep.subr.bf16.mxu0 0
    %573 = vmatpush2.bf16.xpose.msra.mxu0 0
    %574 = vmatprep.subr.bf16.mxu0 0
    %575 = vmatpush2.bf16.xpose.msra.mxu0 0
    %576 = vmatprep.mubr.bf16.mxu0 0
    %577 = vmatmul.mubr.bf16.gmra.mxu0 %v539
    %v578 = vpop.f32.mrf.mxu0
    %v579 = vadd.f32 0.0, %v578
    %v580 = vpop.f32.mrf.mxu0
    %v581 = vpop.f32.mrf.mxu0
    %v582 = vpop.f32.mrf.mxu0
    %583 = vdwg.mxu0
    %v584 = vmul.f32 %v441, 0.25
    %v585 = vmul.f32 %v487, 0.25
    %v586 = vmul.f32 %v533, 0.25
    %v587 = vmul.f32 %v579, 0.25
    %v592 = vlaneseq
    %v593 = vshrl.u32 %v592, 7
    %v594 = vsub.s32 0, %v593
    %v595 = vrot.slane %v130, %v594
    %v596 = vlaneseq
    %v597 = vshrl.u32 %v596, 7
    %v598 = vsub.s32 0, %v597
    %v599 = vrot.slane %v131, %v598
    %v600 = vlaneseq
    %v601 = vshrl.u32 %v600, 7
    %v602 = vsub.s32 0, %v601
    %v603 = vrot.slane %v132, %v602
    %v604 = vlaneseq
    %v605 = vshrl.u32 %v604, 7
    %v606 = vsub.s32 0, %v605
    %v607 = vrot.slane %v133, %v606
    %v612 = vadd.f32 %v584, %v595
    %v613 = vadd.f32 %v585, %v599
    %v614 = vadd.f32 %v586, %v603
    %v615 = vadd.f32 %v587, %v607
    %vm616 = vcmask 64512
    %v617 = vsel %vm616, %v612, -inf
    %618 = vmax.xlane.f32.xlu0 %v617
    %v619 = vpop.xlane.xlu0 %618
    %v620 = vsel %vm616, %v613, -inf
    %621 = vmax.xlane.f32.xlu0 %v620
    %v622 = vpop.xlane.xlu0 %621
    %v623 = vsel %vm616, %v614, -inf
    %624 = vmax.xlane.f32.xlu0 %v623
    %v625 = vpop.xlane.xlu0 %624
    %v626 = vsel %vm616, %v615, -inf
    %627 = vmax.xlane.f32.xlu0 %v626
    %v628 = vpop.xlane.xlu0 %627
    %v629 = vsub.f32 %v612, %v619
    %v630 = vsub.f32 %v613, %v622
    %v631 = vsub.f32 %v614, %v625
    %v632 = vsub.f32 %v615, %v628
    %v633 = vmul.f32 %v629, 1.442695
    %v634 = vpow.pop %v633
    %v635 = vmul.f32 %v630, 1.442695
    %v636 = vpow.pop %v635
    %v637 = vmul.f32 %v631, 1.442695
    %v638 = vpow.pop %v637
    %v639 = vmul.f32 %v632, 1.442695
    %v640 = vpow.pop %v639
    %v641 = vsel %vm616, %v634, 0.0
    %642 = vadd.xlane.f32.xlu0 %v641
    %v643 = vpop.xlane.xlu0 %642
    %v644 = vsel %vm616, %v636, 0.0
    %645 = vadd.xlane.f32.xlu0 %v644
    %v646 = vpop.xlane.xlu0 %645
    %v647 = vsel %vm616, %v638, 0.0
    %648 = vadd.xlane.f32.xlu0 %v647
    %v649 = vpop.xlane.xlu0 %648
    %v650 = vsel %vm616, %v640, 0.0
    %651 = vadd.xlane.f32.xlu0 %v650
    %v652 = vpop.xlane.xlu0 %651
    %v653 = vrcp.pop %v643
    %v654 = vrcp.pop %v646
    %v655 = vrcp.pop %v649
    %v656 = vrcp.pop %v652
    %v657 = vmul.f32 %v634, %v653
    %v658 = vmul.f32 %v636, %v654
    %v659 = vmul.f32 %v638, %v655
    %v660 = vmul.f32 %v640, %v656
    %v661 = vpack.c.bf16 %v657, %v657
    %v662 = vpack.c.bf16 %v658, %v658
    %v663 = vpack.c.bf16 %v659, %v659
    %v664 = vpack.c.bf16 %v660, %v660
    %v666 = vsel %vm616, %v661, 0
    %vm668 = vcmask 1043456
    %v670 = vsel %vm668, %v395, 0
    %672 = vmatprep.subr.bf16.mxu0 0
    %673 = vmatpush1.bf16.msra.mxu0 0
    %674 = vmatprep.subr.bf16.mxu0 0
    %675 = vmatpush1.bf16.msra.mxu0 0
    %676 = vmatprep.subr.bf16.mxu0 0
    %677 = vmatpush1.bf16.msra.mxu0 0
    %678 = vmatprep.subr.bf16.mxu0 0
    %679 = vmatpush1.bf16.msra.mxu0 0
    %680 = vmatprep.subr.bf16.mxu0 0
    %681 = vmatpush1.bf16.msra.mxu0 0
    %682 = vmatprep.subr.bf16.mxu0 0
    %683 = vmatpush1.bf16.msra.mxu0 0
    %684 = vmatprep.subr.bf16.mxu0 0
    %685 = vmatpush1.bf16.msra.mxu0 0
    %686 = vmatprep.subr.bf16.mxu0 0
    %687 = vmatpush1.bf16.msra.mxu0 %v670
    %688 = vmatprep.subr.bf16.mxu0 0
    %689 = vmatpush2.bf16.msra.mxu0 0
    %690 = vmatprep.subr.bf16.mxu0 0
    %691 = vmatpush2.bf16.msra.mxu0 0
    %692 = vmatprep.subr.bf16.mxu0 0
    %693 = vmatpush2.bf16.msra.mxu0 0
    %694 = vmatprep.subr.bf16.mxu0 0
    %695 = vmatpush2.bf16.msra.mxu0 0
    %696 = vmatprep.subr.bf16.mxu0 0
    %697 = vmatpush2.bf16.msra.mxu0 0
    %698 = vmatprep.subr.bf16.mxu0 0
    %699 = vmatpush2.bf16.msra.mxu0 0
    %700 = vmatprep.subr.bf16.mxu0 0
    %701 = vmatpush2.bf16.msra.mxu0 0
    %702 = vmatprep.subr.bf16.mxu0 0
    %703 = vmatpush2.bf16.msra.mxu0 0
    %704 = vmatprep.mubr.bf16.mxu0 0
    %705 = vmatmul.mubr.bf16.gmra.mxu0 %v666
    %v706 = vpop.f32.mrf.mxu0
    %v707 = vadd.f32 0.0, %v706
    %v708 = vpop.f32.mrf.mxu0
    %v709 = vpop.f32.mrf.mxu0
    %v710 = vpop.f32.mrf.mxu0
    %711 = vdwg.mxu0
    %v713 = vsel %vm616, %v662, 0
    %v716 = vsel %vm668, %v396, 0
    %718 = vmatprep.subr.bf16.mxu0 0
    %719 = vmatpush1.bf16.msra.mxu0 0
    %720 = vmatprep.subr.bf16.mxu0 0
    %721 = vmatpush1.bf16.msra.mxu0 0
    %722 = vmatprep.subr.bf16.mxu0 0
    %723 = vmatpush1.bf16.msra.mxu0 0
    %724 = vmatprep.subr.bf16.mxu0 0
    %725 = vmatpush1.bf16.msra.mxu0 0
    %726 = vmatprep.subr.bf16.mxu0 0
    %727 = vmatpush1.bf16.msra.mxu0 0
    %728 = vmatprep.subr.bf16.mxu0 0
    %729 = vmatpush1.bf16.msra.mxu0 0
    %730 = vmatprep.subr.bf16.mxu0 0
    %731 = vmatpush1.bf16.msra.mxu0 0
    %732 = vmatprep.subr.bf16.mxu0 0
    %733 = vmatpush1.bf16.msra.mxu0 %v716
    %734 = vmatprep.subr.bf16.mxu0 0
    %735 = vmatpush2.bf16.msra.mxu0 0
    %736 = vmatprep.subr.bf16.mxu0 0
    %737 = vmatpush2.bf16.msra.mxu0 0
    %738 = vmatprep.subr.bf16.mxu0 0
    %739 = vmatpush2.bf16.msra.mxu0 0
    %740 = vmatprep.subr.bf16.mxu0 0
    %741 = vmatpush2.bf16.msra.mxu0 0
    %742 = vmatprep.subr.bf16.mxu0 0
    %743 = vmatpush2.bf16.msra.mxu0 0
    %744 = vmatprep.subr.bf16.mxu0 0
    %745 = vmatpush2.bf16.msra.mxu0 0
    %746 = vmatprep.subr.bf16.mxu0 0
    %747 = vmatpush2.bf16.msra.mxu0 0
    %748 = vmatprep.subr.bf16.mxu0 0
    %749 = vmatpush2.bf16.msra.mxu0 0
    %750 = vmatprep.mubr.bf16.mxu0 0
    %751 = vmatmul.mubr.bf16.gmra.mxu0 %v713
    %v752 = vpop.f32.mrf.mxu0
    %v753 = vadd.f32 0.0, %v752
    %v754 = vpop.f32.mrf.mxu0
    %v755 = vpop.f32.mrf.mxu0
    %v756 = vpop.f32.mrf.mxu0
    %757 = vdwg.mxu0
    %v759 = vsel %vm616, %v663, 0
    %v762 = vsel %vm668, %v397, 0
    %764 = vmatprep.subr.bf16.mxu0 0
    %765 = vmatpush1.bf16.msra.mxu0 0
    %766 = vmatprep.subr.bf16.mxu0 0
    %767 = vmatpush1.bf16.msra.mxu0 0
    %768 = vmatprep.subr.bf16.mxu0 0
    %769 = vmatpush1.bf16.msra.mxu0 0
    %770 = vmatprep.subr.bf16.mxu0 0
    %771 = vmatpush1.bf16.msra.mxu0 0
    %772 = vmatprep.subr.bf16.mxu0 0
    %773 = vmatpush1.bf16.msra.mxu0 0
    %774 = vmatprep.subr.bf16.mxu0 0
    %775 = vmatpush1.bf16.msra.mxu0 0
    %776 = vmatprep.subr.bf16.mxu0 0
    %777 = vmatpush1.bf16.msra.mxu0 0
    %778 = vmatprep.subr.bf16.mxu0 0
    %779 = vmatpush1.bf16.msra.mxu0 %v762
    %780 = vmatprep.subr.bf16.mxu0 0
    %781 = vmatpush2.bf16.msra.mxu0 0
    %782 = vmatprep.subr.bf16.mxu0 0
    %783 = vmatpush2.bf16.msra.mxu0 0
    %784 = vmatprep.subr.bf16.mxu0 0
    %785 = vmatpush2.bf16.msra.mxu0 0
    %786 = vmatprep.subr.bf16.mxu0 0
    %787 = vmatpush2.bf16.msra.mxu0 0
    %788 = vmatprep.subr.bf16.mxu0 0
    %789 = vmatpush2.bf16.msra.mxu0 0
    %790 = vmatprep.subr.bf16.mxu0 0
    %791 = vmatpush2.bf16.msra.mxu0 0
    %792 = vmatprep.subr.bf16.mxu0 0
    %793 = vmatpush2.bf16.msra.mxu0 0
    %794 = vmatprep.subr.bf16.mxu0 0
    %795 = vmatpush2.bf16.msra.mxu0 0
    %796 = vmatprep.mubr.bf16.mxu0 0
    %797 = vmatmul.mubr.bf16.gmra.mxu0 %v759
    %v798 = vpop.f32.mrf.mxu0
    %v799 = vadd.f32 0.0, %v798
    %v800 = vpop.f32.mrf.mxu0
    %v801 = vpop.f32.mrf.mxu0
    %v802 = vpop.f32.mrf.mxu0
    %803 = vdwg.mxu0
    %v805 = vsel %vm616, %v664, 0
    %v808 = vsel %vm668, %v398, 0
    %810 = vmatprep.subr.bf16.mxu0 0
    %811 = vmatpush1.bf16.msra.mxu0 0
    %812 = vmatprep.subr.bf16.mxu0 0
    %813 = vmatpush1.bf16.msra.mxu0 0
    %814 = vmatprep.subr.bf16.mxu0 0
    %815 = vmatpush1.bf16.msra.mxu0 0
    %816 = vmatprep.subr.bf16.mxu0 0
    %817 = vmatpush1.bf16.msra.mxu0 0
    %818 = vmatprep.subr.bf16.mxu0 0
    %819 = vmatpush1.bf16.msra.mxu0 0
    %820 = vmatprep.subr.bf16.mxu0 0
    %821 = vmatpush1.bf16.msra.mxu0 0
    %822 = vmatprep.subr.bf16.mxu0 0
    %823 = vmatpush1.bf16.msra.mxu0 0
    %824 = vmatprep.subr.bf16.mxu0 0
    %825 = vmatpush1.bf16.msra.mxu0 %v808
    %826 = vmatprep.subr.bf16.mxu0 0
    %827 = vmatpush2.bf16.msra.mxu0 0
    %828 = vmatprep.subr.bf16.mxu0 0
    %829 = vmatpush2.bf16.msra.mxu0 0
    %830 = vmatprep.subr.bf16.mxu0 0
    %831 = vmatpush2.bf16.msra.mxu0 0
    %832 = vmatprep.subr.bf16.mxu0 0
    %833 = vmatpush2.bf16.msra.mxu0 0
    %834 = vmatprep.subr.bf16.mxu0 0
    %835 = vmatpush2.bf16.msra.mxu0 0
    %836 = vmatprep.subr.bf16.mxu0 0
    %837 = vmatpush2.bf16.msra.mxu0 0
    %838 = vmatprep.subr.bf16.mxu0 0
    %839 = vmatpush2.bf16.msra.mxu0 0
    %840 = vmatprep.subr.bf16.mxu0 0
    %841 = vmatpush2.bf16.msra.mxu0 0
    %842 = vmatprep.mubr.bf16.mxu0 0
    %843 = vmatmul.mubr.bf16.gmra.mxu0 %v805
    %v844 = vpop.f32.mrf.mxu0
    %v845 = vadd.f32 0.0, %v844
    %v846 = vpop.f32.mrf.mxu0
    %v847 = vpop.f32.mrf.mxu0
    %v848 = vpop.f32.mrf.mxu0
    %849 = vdwg.mxu0
    %852 = vrot.lane.b32.xlu0 %v753, 16
    %v853 = vpop.permute.xlu0 %852
    %854 = vrot.lane.b32.xlu0 %v845, 16
    %v855 = vpop.permute.xlu0 %854
    %v858 = vsel %vm399, %v707, %v853
    %v859 = vsel %vm399, %v799, %v855
    %v860 = vpack.c.bf16 %v859, %v858
    %v861 = vld [vmem:[%s4] sm:$0xf]
    %v862 = vld [vmem:[%s4 + $0x4] sm:$0xf]
    %v863 = vld [vmem:[%s4 + $0x8] sm:$0xf]
    %v864 = vld [vmem:[%s4 + $0xc] sm:$0xf]
    %865 = vrot.lane.b32.xlu0 %v134, 96
    %v866 = vpop.permute.xlu0 %865
    %v867 = vrot.slane %v866, 1
    %v868 = vlaneseq
    %v869 = vshrl.u32 %v868, 7
    %v870 = vsub.s32 0, %v869
    %v871 = vrot.slane %v867, %v870
    %v877 = vunpack.c.l.b16 %v861
    %v878 = vunpack.c.l.b16 %v862
    %v879 = vunpack.c.l.b16 %v863
    %v880 = vunpack.c.l.b16 %v864
    %v881 = vpack.c.b16 %v878, %v877
    %v882 = vpack.c.b16 %v880, %v879
    %v886 = vsel %vm147, %v860, 0
    %888 = vmatprep.subr.bf16.mxu0 0
    %889 = vmatpush1.bf16.msra.mxu0 0
    %890 = vmatprep.subr.bf16.mxu0 0
    %891 = vmatpush1.bf16.msra.mxu0 0
    %892 = vmatprep.subr.bf16.mxu0 0
    %893 = vmatpush1.bf16.msra.mxu0 0
    %894 = vmatprep.subr.bf16.mxu0 0
    %895 = vmatpush1.bf16.msra.mxu0 0
    %896 = vmatprep.subr.bf16.mxu0 0
    %897 = vmatpush1.bf16.msra.mxu0 0
    %898 = vmatprep.subr.bf16.mxu0 0
    %899 = vmatpush1.bf16.msra.mxu0 0
    %900 = vmatprep.subr.bf16.mxu0 0
    %901 = vmatpush1.bf16.msra.mxu0 %v882
    %902 = vmatprep.subr.bf16.mxu0 0
    %903 = vmatpush1.bf16.msra.mxu0 %v881
    %904 = vmatprep.subr.bf16.mxu0 0
    %905 = vmatpush2.bf16.msra.mxu0 0
    %906 = vmatprep.subr.bf16.mxu0 0
    %907 = vmatpush2.bf16.msra.mxu0 0
    %908 = vmatprep.subr.bf16.mxu0 0
    %909 = vmatpush2.bf16.msra.mxu0 0
    %910 = vmatprep.subr.bf16.mxu0 0
    %911 = vmatpush2.bf16.msra.mxu0 0
    %912 = vmatprep.subr.bf16.mxu0 0
    %913 = vmatpush2.bf16.msra.mxu0 0
    %914 = vmatprep.subr.bf16.mxu0 0
    %915 = vmatpush2.bf16.msra.mxu0 0
    %916 = vmatprep.subr.bf16.mxu0 0
    %917 = vmatpush2.bf16.msra.mxu0 0
    %918 = vmatprep.subr.bf16.mxu0 0
    %919 = vmatpush2.bf16.msra.mxu0 0
    %920 = vmatprep.mubr.bf16.mxu0 0
    %921 = vmatmul.mubr.bf16.gmra.mxu0 %v886
    %v922 = vpop.f32.mrf.mxu0
    %v923 = vadd.f32 %v871, %v922
    %v924 = vpop.f32.mrf.mxu0
    %v925 = vpop.f32.mrf.mxu0
    %v926 = vadd.f32 %v871, %v925
    %v927 = vpop.f32.mrf.mxu0
    %928 = vdwg.mxu0
    %v929 = vadd.f32 %v116, %v923
    %v930 = vadd.f32 %v119, %v926
    %v931 = vsel %vm147, %v929, 0.0
    %932 = vadd.xlane.f32.xlu0 %v931
    %v933 = vpop.xlane.xlu0 %932
    %v934 = vsel %vm147, %v930, 0.0
    %935 = vadd.xlane.f32.xlu0 %v934
    %v936 = vpop.xlane.xlu0 %935
    %v937 = vmul.f32 %v933, %v154
    %v938 = vmul.f32 %v936, %v154
    %v939 = vsub.f32 %v929, %v937
    %v940 = vsub.f32 %v930, %v938
    %v941 = vmul.f32 %v939, %v939
    %v942 = vmul.f32 %v940, %v940
    %v943 = vsel %vm147, %v941, 0.0
    %944 = vadd.xlane.f32.xlu0 %v943
    %v945 = vpop.xlane.xlu0 %944
    %v946 = vsel %vm147, %v942, 0.0
    %947 = vadd.xlane.f32.xlu0 %v946
    %v948 = vpop.xlane.xlu0 %947
    %v949 = vmul.f32 %v945, %v154
    %v950 = vmul.f32 %v948, %v154
    %v951 = vadd.f32 %v949, 1e-05
    %v952 = vadd.f32 %v950, 1e-05
    %v953 = vrsqrt.pop %v951
    %v954 = vrsqrt.pop %v952
    %v955 = vmul.f32 %v939, %v953
    %v956 = vmul.f32 %v940, %v954
    %957 = vrot.lane.b32.xlu0 %v134, 64
    %v958 = vpop.permute.xlu0 %957
    %v959 = vrot.slane %v958, 1
    %v960 = vlaneseq
    %v961 = vshrl.u32 %v960, 7
    %v962 = vsub.s32 0, %v961
    %v963 = vrot.slane %v959, %v962
    %v965 = vmul.f32 %v955, %v963
    %v966 = vmul.f32 %v956, %v963
    %967 = vrot.lane.b32.xlu0 %v134, 32
    %v968 = vpop.permute.xlu0 %967
    %v969 = vrot.slane %v968, 1
    %v970 = vlaneseq
    %v971 = vshrl.u32 %v970, 7
    %v972 = vsub.s32 0, %v971
    %v973 = vrot.slane %v969, %v972
    %v975 = vadd.f32 %v965, %v973
    %v976 = vadd.f32 %v966, %v973
    %v977 = vpack.c.bf16 %v976, %v975
    %v978 = vld [vmem:[%s5] sm:$0xf]
    %v979 = vld [vmem:[%s5 + $0x4] sm:$0xf]
    %v980 = vld [vmem:[%s5 + $0x8] sm:$0xf]
    %v981 = vld [vmem:[%s5 + $0xc] sm:$0xf]
    %v982 = vrot.slane %v134, 2
    %v983 = vlaneseq
    %v984 = vshrl.u32 %v983, 7
    %v985 = vsub.s32 0, %v984
    %v986 = vrot.slane %v982, %v985
    %v992 = vunpack.c.l.b16 %v978
    %v993 = vunpack.c.l.b16 %v979
    %v994 = vunpack.c.l.b16 %v980
    %v995 = vunpack.c.l.b16 %v981
    %v996 = vpack.c.b16 %v993, %v992
    %v997 = vpack.c.b16 %v995, %v994
    %v1001 = vsel %vm147, %v977, 0
    %1003 = vmatprep.subr.bf16.mxu0 0
    %1004 = vmatpush1.bf16.msra.mxu0 0
    %1005 = vmatprep.subr.bf16.mxu0 0
    %1006 = vmatpush1.bf16.msra.mxu0 0
    %1007 = vmatprep.subr.bf16.mxu0 0
    %1008 = vmatpush1.bf16.msra.mxu0 0
    %1009 = vmatprep.subr.bf16.mxu0 0
    %1010 = vmatpush1.bf16.msra.mxu0 0
    %1011 = vmatprep.subr.bf16.mxu0 0
    %1012 = vmatpush1.bf16.msra.mxu0 0
    %1013 = vmatprep.subr.bf16.mxu0 0
    %1014 = vmatpush1.bf16.msra.mxu0 0
    %1015 = vmatprep.subr.bf16.mxu0 0
    %1016 = vmatpush1.bf16.msra.mxu0 %v997
    %1017 = vmatprep.subr.bf16.mxu0 0
    %1018 = vmatpush1.bf16.msra.mxu0 %v996
    %1019 = vmatprep.subr.bf16.mxu0 0
    %1020 = vmatpush2.bf16.msra.mxu0 0
    %1021 = vmatprep.subr.bf16.mxu0 0
    %1022 = vmatpush2.bf16.msra.mxu0 0
    %1023 = vmatprep.subr.bf16.mxu0 0
    %1024 = vmatpush2.bf16.msra.mxu0 0
    %1025 = vmatprep.subr.bf16.mxu0 0
    %1026 = vmatpush2.bf16.msra.mxu0 0
    %1027 = vmatprep.subr.bf16.mxu0 0
    %1028 = vmatpush2.bf16.msra.mxu0 0
    %1029 = vmatprep.subr.bf16.mxu0 0
    %1030 = vmatpush2.bf16.msra.mxu0 0
    %1031 = vmatprep.subr.bf16.mxu0 0
    %1032 = vmatpush2.bf16.msra.mxu0 0
    %1033 = vmatprep.subr.bf16.mxu0 0
    %1034 = vmatpush2.bf16.msra.mxu0 0
    %1035 = vmatprep.mubr.bf16.mxu0 0
    %1036 = vmatmul.mubr.bf16.gmra.mxu0 %v1001
    %v1037 = vpop.f32.mrf.mxu0
    %v1038 = vadd.f32 %v986, %v1037
    %v1039 = vpop.f32.mrf.mxu0
    %v1040 = vpop.f32.mrf.mxu0
    %v1041 = vadd.f32 %v986, %v1040
    %v1042 = vpop.f32.mrf.mxu0
    %1043 = vdwg.mxu0
    %v1044 = vmul.f32 %v1038, 0.5
    %v1045 = vmul.f32 %v1041, 0.5
    %v1046 = vmul.f32 %v1038, 0.70710677
    %v1047 = vmul.f32 %v1041, 0.70710677
    %vm1048 = vcmp.ge.f32.partialorder %v1046, 0.0
    %vm1049 = vcmp.ge.f32.partialorder %v1047, 0.0
    %v1050 = vsel %vm1048, 1.0, -1.0
    %v1051 = vsel %vm1049, 1.0, -1.0
    %v1052 = vand.u32 2147483647, %v1046
    %v1053 = vand.u32 2147483647, %v1047
    %v1054 = vmul.f32 %v1052, 0.3275911
    %v1055 = vmul.f32 %v1053, 0.3275911
    %v1056 = vadd.f32 %v1054, 1.0
    %v1057 = vadd.f32 %v1055, 1.0
    %v1058 = vrcp.pop %v1056
    %v1059 = vmul.f32 1.0, %v1058
    %v1060 = vrcp.pop %v1057
    %v1061 = vmul.f32 1.0, %v1060
    %v1062 = vmul.f32 %v1059, 1.0614054
    %v1063 = vmul.f32 %v1061, 1.0614054
    %v1064 = vadd.f32 %v1062, -1.4531521
    %v1065 = vadd.f32 %v1063, -1.4531521
    %v1066 = vmul.f32 %v1064, %v1059
    %v1067 = vmul.f32 %v1065, %v1061
    %v1068 = vadd.f32 %v1066, 1.4214138
    %v1069 = vadd.f32 %v1067, 1.4214138
    %v1070 = vmul.f32 %v1068, %v1059
    %v1071 = vmul.f32 %v1069, %v1061
    %v1072 = vadd.f32 %v1070, -0.28449672
    %v1073 = vadd.f32 %v1071, -0.28449672
    %v1074 = vmul.f32 %v1072, %v1059
    %v1075 = vmul.f32 %v1073, %v1061
    %v1076 = vadd.f32 %v1074, 0.2548296
    %v1077 = vadd.f32 %v1075, 0.2548296
    %v1078 = vmul.f32 %v1076, %v1059
    %v1079 = vmul.f32 %v1077, %v1061
    %v1080 = vsub.f32 0.0, %v1052
    %v1081 = vsub.f32 0.0, %v1053
    %v1082 = vmul.f32 %v1080, %v1052
    %v1083 = vmul.f32 %v1081, %v1053
    %v1084 = vmul.f32 %v1082, 1.442695
    %v1085 = vpow.pop %v1084
    %v1086 = vmul.f32 %v1083, 1.442695
    %v1087 = vpow.pop %v1086
    %v1088 = vmul.f32 %v1078, %v1085
    %v1089 = vmul.f32 %v1079, %v1087
    %v1090 = vsub.f32 1.0, %v1088
    %v1091 = vsub.f32 1.0, %v1089
    %v1092 = vmul.f32 %v1050, %v1090
    %v1093 = vmul.f32 %v1051, %v1091
    %v1094 = vadd.f32 %v1092, 1.0
    %v1095 = vadd.f32 %v1093, 1.0
    %v1096 = vmul.f32 %v1044, %v1094
    %v1097 = vmul.f32 %v1045, %v1095
    %v1098 = vpack.c.bf16 %v1097, %v1096
    %v1099 = vld [vmem:[%s6] sm:$0xf]
    %v1100 = vld [vmem:[%s6 + $0x4] sm:$0xf]
    %v1101 = vld [vmem:[%s6 + $0x8] sm:$0xf]
    %v1102 = vld [vmem:[%s6 + $0xc] sm:$0xf]
    %v1103 = vld [vmem:[%s6 + $0x10] sm:$0xf]
    %v1104 = vld [vmem:[%s6 + $0x14] sm:$0xf]
    %v1105 = vld [vmem:[%s6 + $0x18] sm:$0xf]
    %v1106 = vld [vmem:[%s6 + $0x1c] sm:$0xf]
    %v1107 = vrot.slane %v958, 2
    %v1108 = vlaneseq
    %v1109 = vshrl.u32 %v1108, 7
    %v1110 = vsub.s32 0, %v1109
    %v1111 = vrot.slane %v1107, %v1110
    %v1121 = vunpack.c.l.b16 %v1099
    %v1122 = vunpack.c.l.b16 %v1100
    %v1123 = vunpack.c.l.b16 %v1101
    %v1124 = vunpack.c.l.b16 %v1102
    %v1125 = vunpack.c.l.b16 %v1103
    %v1126 = vunpack.c.l.b16 %v1104
    %v1127 = vunpack.c.l.b16 %v1105
    %v1128 = vunpack.c.l.b16 %v1106
    %v1129 = vpack.c.b16 %v1122, %v1121
    %v1130 = vpack.c.b16 %v1124, %v1123
    %v1131 = vpack.c.b16 %v1126, %v1125
    %v1132 = vpack.c.b16 %v1128, %v1127
    %vm1137 = vcmask 523264
    %v1139 = vsel %vm1137, %v1098, 0
    %1141 = vmatprep.subr.bf16.mxu0 0
    %1142 = vmatpush1.bf16.msra.mxu0 0
    %1143 = vmatprep.subr.bf16.mxu0 0
    %1144 = vmatpush1.bf16.msra.mxu0 0
    %1145 = vmatprep.subr.bf16.mxu0 0
    %1146 = vmatpush1.bf16.msra.mxu0 0
    %1147 = vmatprep.subr.bf16.mxu0 0
    %1148 = vmatpush1.bf16.msra.mxu0 0
    %1149 = vmatprep.subr.bf16.mxu0 0
    %1150 = vmatpush1.bf16.msra.mxu0 %v1132
    %1151 = vmatprep.subr.bf16.mxu0 0
    %1152 = vmatpush1.bf16.msra.mxu0 %v1131
    %1153 = vmatprep.subr.bf16.mxu0 0
    %1154 = vmatpush1.bf16.msra.mxu0 %v1130
    %1155 = vmatprep.subr.bf16.mxu0 0
    %1156 = vmatpush1.bf16.msra.mxu0 %v1129
    %1157 = vmatprep.subr.bf16.mxu0 0
    %1158 = vmatpush2.bf16.msra.mxu0 0
    %1159 = vmatprep.subr.bf16.mxu0 0
    %1160 = vmatpush2.bf16.msra.mxu0 0
    %1161 = vmatprep.subr.bf16.mxu0 0
    %1162 = vmatpush2.bf16.msra.mxu0 0
    %1163 = vmatprep.subr.bf16.mxu0 0
    %1164 = vmatpush2.bf16.msra.mxu0 0
    %1165 = vmatprep.subr.bf16.mxu0 0
    %1166 = vmatpush2.bf16.msra.mxu0 0
    %1167 = vmatprep.subr.bf16.mxu0 0
    %1168 = vmatpush2.bf16.msra.mxu0 0
    %1169 = vmatprep.subr.bf16.mxu0 0
    %1170 = vmatpush2.bf16.msra.mxu0 0
    %1171 = vmatprep.subr.bf16.mxu0 0
    %1172 = vmatpush2.bf16.msra.mxu0 0
    %1173 = vmatprep.mubr.bf16.mxu0 0
    %1174 = vmatmul.mubr.bf16.gmra.mxu0 %v1139
    %v1175 = vpop.f32.mrf.mxu0
    %v1176 = vadd.f32 %v1111, %v1175
    %v1177 = vpop.f32.mrf.mxu0
    %v1178 = vpop.f32.mrf.mxu0
    %v1179 = vadd.f32 %v1111, %v1178
    %v1180 = vpop.f32.mrf.mxu0
    %1181 = vdwg.mxu0
    %v1182 = vadd.f32 %v929, %v1176
    %v1183 = vadd.f32 %v930, %v1179
    %s1184 = scalar_lea.vmem [#allocation2], 1
    %v1185 = vld [vmem:[%s1184] ss:$2 sm:$0x7]
    %s1186 = scalar_lea.vmem %s3, 48
    %v1187 = vld [vmem:[%s1186] sm:$0xf]
    %v1188 = vld [vmem:[%s1186 + $0x4] sm:$0xf]
    %v1189 = vld [vmem:[%s1186 + $0x8] sm:$0xf]
    %v1190 = vld [vmem:[%s1186 + $0xc] sm:$0xf]
    %v1191 = vld [vmem:[%s1186 + $0x10] sm:$0xf]
    %v1192 = vld [vmem:[%s1186 + $0x14] sm:$0xf]
    %v1193 = vld [vmem:[%s1186 + $0x18] sm:$0xf]
    %v1194 = vld [vmem:[%s1186 + $0x1c] sm:$0xf]
    %v1195 = vld [vmem:[%s1186 + $0x20] sm:$0xf]
    %v1196 = vld [vmem:[%s1186 + $0x24] sm:$0xf]
    %v1197 = vld [vmem:[%s1186 + $0x28] sm:$0xf]
    %v1198 = vld [vmem:[%s1186 + $0x2c] sm:$0xf]
    %v1199 = vsel %vm147, %v1182, 0.0
    %1200 = vadd.xlane.f32.xlu0 %v1199
    %v1201 = vpop.xlane.xlu0 %1200
    %v1202 = vsel %vm147, %v1183, 0.0
    %1203 = vadd.xlane.f32.xlu0 %v1202
    %v1204 = vpop.xlane.xlu0 %1203
    %v1205 = vmul.f32 %v1201, %v154
    %v1206 = vmul.f32 %v1204, %v154
    %v1207 = vsub.f32 %v1182, %v1205
    %v1208 = vsub.f32 %v1183, %v1206
    %v1209 = vmul.f32 %v1207, %v1207
    %v1210 = vmul.f32 %v1208, %v1208
    %v1211 = vsel %vm147, %v1209, 0.0
    %1212 = vadd.xlane.f32.xlu0 %v1211
    %v1213 = vpop.xlane.xlu0 %1212
    %v1214 = vsel %vm147, %v1210, 0.0
    %1215 = vadd.xlane.f32.xlu0 %v1214
    %v1216 = vpop.xlane.xlu0 %1215
    %v1217 = vmul.f32 %v1213, %v154
    %v1218 = vmul.f32 %v1216, %v154
    %v1219 = vadd.f32 %v1217, 1e-05
    %v1220 = vadd.f32 %v1218, 1e-05
    %v1221 = vrsqrt.pop %v1219
    %v1222 = vrsqrt.pop %v1220
    %v1223 = vmul.f32 %v1207, %v1221
    %v1224 = vmul.f32 %v1208, %v1222
    %v1226 = vlaneseq
    %v1227 = vshrl.u32 %v1226, 7
    %v1228 = vsub.s32 0, %v1227
    %v1229 = vrot.slane %v1185, %v1228
    %v1231 = vmul.f32 %v1223, %v1229
    %v1232 = vmul.f32 %v1224, %v1229
    %1233 = vrot.lane.b32.xlu0 %v1229, 96
    %v1234 = vpop.permute.xlu0 %1233
    %v1236 = vadd.f32 %v1231, %v1234
    %v1237 = vadd.f32 %v1232, %v1234
    %v1238 = vpack.c.bf16 %v1237, %v1236
    %v1243 = vunpack.c.l.b16 %v1187
    %v1244 = vunpack.c.l.b16 %v1188
    %v1245 = vunpack.c.l.b16 %v1189
    %v1246 = vunpack.c.l.b16 %v1190
    %v1247 = vpack.c.b16 %v1244, %v1243
    %v1248 = vpack.c.b16 %v1246, %v1245
    %1251 = vrot.lane.b32.xlu0 %v1229, 64
    %v1252 = vpop.permute.xlu0 %1251
    %v1255 = vsel %vm147, %v1238, 0
    %1257 = vmatprep.subr.bf16.mxu0 0
    %1258 = vmatpush1.bf16.msra.mxu0 0
    %1259 = vmatprep.subr.bf16.mxu0 0
    %1260 = vmatpush1.bf16.msra.mxu0 0
    %1261 = vmatprep.subr.bf16.mxu0 0
    %1262 = vmatpush1.bf16.msra.mxu0 0
    %1263 = vmatprep.subr.bf16.mxu0 0
    %1264 = vmatpush1.bf16.msra.mxu0 0
    %1265 = vmatprep.subr.bf16.mxu0 0
    %1266 = vmatpush1.bf16.msra.mxu0 0
    %1267 = vmatprep.subr.bf16.mxu0 0
    %1268 = vmatpush1.bf16.msra.mxu0 0
    %1269 = vmatprep.subr.bf16.mxu0 0
    %1270 = vmatpush1.bf16.msra.mxu0 %v1248
    %1271 = vmatprep.subr.bf16.mxu0 0
    %1272 = vmatpush1.bf16.msra.mxu0 %v1247
    %1273 = vmatprep.subr.bf16.mxu0 0
    %1274 = vmatpush2.bf16.msra.mxu0 0
    %1275 = vmatprep.subr.bf16.mxu0 0
    %1276 = vmatpush2.bf16.msra.mxu0 0
    %1277 = vmatprep.subr.bf16.mxu0 0
    %1278 = vmatpush2.bf16.msra.mxu0 0
    %1279 = vmatprep.subr.bf16.mxu0 0
    %1280 = vmatpush2.bf16.msra.mxu0 0
    %1281 = vmatprep.subr.bf16.mxu0 0
    %1282 = vmatpush2.bf16.msra.mxu0 0
    %1283 = vmatprep.subr.bf16.mxu0 0
    %1284 = vmatpush2.bf16.msra.mxu0 0
    %1285 = vmatprep.subr.bf16.mxu0 0
    %1286 = vmatpush2.bf16.msra.mxu0 0
    %1287 = vmatprep.subr.bf16.mxu0 0
    %1288 = vmatpush2.bf16.msra.mxu0 0
    %1289 = vmatprep.mubr.bf16.mxu0 0
    %1290 = vmatmul.mubr.bf16.gmra.mxu0 %v1255
    %v1291 = vpop.f32.mrf.mxu0
    %v1292 = vadd.f32 %v1252, %v1291
    %v1293 = vpop.f32.mrf.mxu0
    %v1294 = vpop.f32.mrf.mxu0
    %v1295 = vadd.f32 %v1252, %v1294
    %v1296 = vpop.f32.mrf.mxu0
    %1297 = vdwg.mxu0
    %v1302 = vunpack.c.l.b16 %v1191
    %v1303 = vunpack.c.l.b16 %v1192
    %v1304 = vunpack.c.l.b16 %v1193
    %v1305 = vunpack.c.l.b16 %v1194
    %v1306 = vpack.c.b16 %v1303, %v1302
    %v1307 = vpack.c.b16 %v1305, %v1304
    %1310 = vrot.lane.b32.xlu0 %v1229, 32
    %v1311 = vpop.permute.xlu0 %1310
    %1313 = vmatprep.subr.bf16.mxu0 0
    %1314 = vmatpush1.bf16.msra.mxu0 0
    %1315 = vmatprep.subr.bf16.mxu0 0
    %1316 = vmatpush1.bf16.msra.mxu0 0
    %1317 = vmatprep.subr.bf16.mxu0 0
    %1318 = vmatpush1.bf16.msra.mxu0 0
    %1319 = vmatprep.subr.bf16.mxu0 0
    %1320 = vmatpush1.bf16.msra.mxu0 0
    %1321 = vmatprep.subr.bf16.mxu0 0
    %1322 = vmatpush1.bf16.msra.mxu0 0
    %1323 = vmatprep.subr.bf16.mxu0 0
    %1324 = vmatpush1.bf16.msra.mxu0 0
    %1325 = vmatprep.subr.bf16.mxu0 0
    %1326 = vmatpush1.bf16.msra.mxu0 %v1307
    %1327 = vmatprep.subr.bf16.mxu0 0
    %1328 = vmatpush1.bf16.msra.mxu0 %v1306
    %1329 = vmatprep.subr.bf16.mxu0 0
    %1330 = vmatpush2.bf16.msra.mxu0 0
    %1331 = vmatprep.subr.bf16.mxu0 0
    %1332 = vmatpush2.bf16.msra.mxu0 0
    %1333 = vmatprep.subr.bf16.mxu0 0
    %1334 = vmatpush2.bf16.msra.mxu0 0
    %1335 = vmatprep.subr.bf16.mxu0 0
    %1336 = vmatpush2.bf16.msra.mxu0 0
    %1337 = vmatprep.subr.bf16.mxu0 0
    %1338 = vmatpush2.bf16.msra.mxu0 0
    %1339 = vmatprep.subr.bf16.mxu0 0
    %1340 = vmatpush2.bf16.msra.mxu0 0
    %1341 = vmatprep.subr.bf16.mxu0 0
    %1342 = vmatpush2.bf16.msra.mxu0 0
    %1343 = vmatprep.subr.bf16.mxu0 0
    %1344 = vmatpush2.bf16.msra.mxu0 0
    %1345 = vmatprep.mubr.bf16.mxu0 0
    %1346 = vmatmul.mubr.bf16.gmra.mxu0 %v1255
    %v1347 = vpop.f32.mrf.mxu0
    %v1348 = vadd.f32 %v1311, %v1347
    %v1349 = vpop.f32.mrf.mxu0
    %v1350 = vpop.f32.mrf.mxu0
    %v1351 = vadd.f32 %v1311, %v1350
    %v1352 = vpop.f32.mrf.mxu0
    %1353 = vdwg.mxu0
    %v1354 = vrot.slane %v1185, 1
    %v1355 = vlaneseq
    %v1356 = vshrl.u32 %v1355, 7
    %v1357 = vsub.s32 0, %v1356
    %v1358 = vrot.slane %v1354, %v1357
    %v1364 = vunpack.c.l.b16 %v1195
    %v1365 = vunpack.c.l.b16 %v1196
    %v1366 = vunpack.c.l.b16 %v1197
    %v1367 = vunpack.c.l.b16 %v1198
    %v1368 = vpack.c.b16 %v1365, %v1364
    %v1369 = vpack.c.b16 %v1367, %v1366
    %1372 = vmatprep.subr.bf16.mxu0 0
    %1373 = vmatpush1.bf16.msra.mxu0 0
    %1374 = vmatprep.subr.bf16.mxu0 0
    %1375 = vmatpush1.bf16.msra.mxu0 0
    %1376 = vmatprep.subr.bf16.mxu0 0
    %1377 = vmatpush1.bf16.msra.mxu0 0
    %1378 = vmatprep.subr.bf16.mxu0 0
    %1379 = vmatpush1.bf16.msra.mxu0 0
    %1380 = vmatprep.subr.bf16.mxu0 0
    %1381 = vmatpush1.bf16.msra.mxu0 0
    %1382 = vmatprep.subr.bf16.mxu0 0
    %1383 = vmatpush1.bf16.msra.mxu0 0
    %1384 = vmatprep.subr.bf16.mxu0 0
    %1385 = vmatpush1.bf16.msra.mxu0 %v1369
    %1386 = vmatprep.subr.bf16.mxu0 0
    %1387 = vmatpush1.bf16.msra.mxu0 %v1368
    %1388 = vmatprep.subr.bf16.mxu0 0
    %1389 = vmatpush2.bf16.msra.mxu0 0
    %1390 = vmatprep.subr.bf16.mxu0 0
    %1391 = vmatpush2.bf16.msra.mxu0 0
    %1392 = vmatprep.subr.bf16.mxu0 0
    %1393 = vmatpush2.bf16.msra.mxu0 0
    %1394 = vmatprep.subr.bf16.mxu0 0
    %1395 = vmatpush2.bf16.msra.mxu0 0
    %1396 = vmatprep.subr.bf16.mxu0 0
    %1397 = vmatpush2.bf16.msra.mxu0 0
    %1398 = vmatprep.subr.bf16.mxu0 0
    %1399 = vmatpush2.bf16.msra.mxu0 0
    %1400 = vmatprep.subr.bf16.mxu0 0
    %1401 = vmatpush2.bf16.msra.mxu0 0
    %1402 = vmatprep.subr.bf16.mxu0 0
    %1403 = vmatpush2.bf16.msra.mxu0 0
    %1404 = vmatprep.mubr.bf16.mxu0 0
    %1405 = vmatmul.mubr.bf16.gmra.mxu0 %v1255
    %v1406 = vpop.f32.mrf.mxu0
    %v1407 = vadd.f32 %v1358, %v1406
    %v1408 = vpop.f32.mrf.mxu0
    %v1409 = vpop.f32.mrf.mxu0
    %v1410 = vadd.f32 %v1358, %v1409
    %v1411 = vpop.f32.mrf.mxu0
    %1412 = vdwg.mxu0
    %1415 = vrot.lane.b32.xlu0 %v1292, 112
    %v1416 = vpop.permute.xlu0 %1415
    %1417 = vrot.lane.b32.xlu0 %v1295, 112
    %v1418 = vpop.permute.xlu0 %1417
    %v1421 = vpack.c.bf16 %v1292, %v1292
    %v1422 = vpack.c.bf16 %v1416, %v1416
    %v1423 = vpack.c.bf16 %v1295, %v1295
    %v1424 = vpack.c.bf16 %v1418, %v1418
    %1427 = vrot.lane.b32.xlu0 %v1348, 112
    %v1428 = vpop.permute.xlu0 %1427
    %1429 = vrot.lane.b32.xlu0 %v1351, 112
    %v1430 = vpop.permute.xlu0 %1429
    %v1433 = vpack.c.bf16 %v1348, %v1348
    %v1434 = vpack.c.bf16 %v1428, %v1428
    %v1435 = vpack.c.bf16 %v1351, %v1351
    %v1436 = vpack.c.bf16 %v1430, %v1430
    %1439 = vrot.lane.b32.xlu0 %v1407, 112
    %v1440 = vpop.permute.xlu0 %1439
    %1441 = vrot.lane.b32.xlu0 %v1410, 112
    %v1442 = vpop.permute.xlu0 %1441
    %v1445 = vpack.c.bf16 %v1407, %v1407
    %v1446 = vpack.c.bf16 %v1440, %v1440
    %v1447 = vpack.c.bf16 %v1410, %v1410
    %v1448 = vpack.c.bf16 %v1442, %v1442
    %v1450 = vsel %vm399, %v1421, 0
    %v1453 = vsel %vm399, %v1433, 0
    %1455 = vmatprep.subr.bf16.mxu0 0
    %1456 = vmatpush1.bf16.xpose.msra.mxu0 0
    %1457 = vmatprep.subr.bf16.mxu0 0
    %1458 = vmatpush1.bf16.xpose.msra.mxu0 0
    %1459 = vmatprep.subr.bf16.mxu0 0
    %1460 = vmatpush1.bf16.xpose.msra.mxu0 0
    %1461 = vmatprep.subr.bf16.mxu0 0
    %1462 = vmatpush1.bf16.xpose.msra.mxu0 0
    %1463 = vmatprep.subr.bf16.mxu0 0
    %1464 = vmatpush1.bf16.xpose.msra.mxu0 0
    %1465 = vmatprep.subr.bf16.mxu0 0
    %1466 = vmatpush1.bf16.xpose.msra.mxu0 0
    %1467 = vmatprep.subr.bf16.mxu0 0
    %1468 = vmatpush1.bf16.xpose.msra.mxu0 0
    %1469 = vmatprep.subr.bf16.mxu0 0
    %1470 = vmatpush1.bf16.xpose.msra.mxu0 %v1453
    %1471 = vmatprep.subr.bf16.mxu0 0
    %1472 = vmatpush2.bf16.xpose.msra.mxu0 0
    %1473 = vmatprep.subr.bf16.mxu0 0
    %1474 = vmatpush2.bf16.xpose.msra.mxu0 0
    %1475 = vmatprep.subr.bf16.mxu0 0
    %1476 = vmatpush2.bf16.xpose.msra.mxu0 0
    %1477 = vmatprep.subr.bf16.mxu0 0
    %1478 = vmatpush2.bf16.xpose.msra.mxu0 0
    %1479 = vmatprep.subr.bf16.mxu0 0
    %1480 = vmatpush2.bf16.xpose.msra.mxu0 0
    %1481 = vmatprep.subr.bf16.mxu0 0
    %1482 = vmatpush2.bf16.xpose.msra.mxu0 0
    %1483 = vmatprep.subr.bf16.mxu0 0
    %1484 = vmatpush2.bf16.xpose.msra.mxu0 0
    %1485 = vmatprep.subr.bf16.mxu0 0
    %1486 = vmatpush2.bf16.xpose.msra.mxu0 0
    %1487 = vmatprep.mubr.bf16.mxu0 0
    %1488 = vmatmul.mubr.bf16.gmra.mxu0 %v1450
    %v1489 = vpop.f32.mrf.mxu0
    %v1490 = vadd.f32 0.0, %v1489
    %v1491 = vpop.f32.mrf.mxu0
    %v1492 = vpop.f32.mrf.mxu0
    %v1493 = vpop.f32.mrf.mxu0
    %1494 = vdwg.mxu0
    %v1496 = vsel %vm399, %v1422, 0
    %v1499 = vsel %vm399, %v1434, 0
    %1501 = vmatprep.subr.bf16.mxu0 0
    %1502 = vmatpush1.bf16.xpose.msra.mxu0 0
    %1503 = vmatprep.subr.bf16.mxu0 0
    %1504 = vmatpush1.bf16.xpose.msra.mxu0 0
    %1505 = vmatprep.subr.bf16.mxu0 0
    %1506 = vmatpush1.bf16.xpose.msra.mxu0 0
    %1507 = vmatprep.subr.bf16.mxu0 0
    %1508 = vmatpush1.bf16.xpose.msra.mxu0 0
    %1509 = vmatprep.subr.bf16.mxu0 0
    %1510 = vmatpush1.bf16.xpose.msra.mxu0 0
    %1511 = vmatprep.subr.bf16.mxu0 0
    %1512 = vmatpush1.bf16.xpose.msra.mxu0 0
    %1513 = vmatprep.subr.bf16.mxu0 0
    %1514 = vmatpush1.bf16.xpose.msra.mxu0 0
    %1515 = vmatprep.subr.bf16.mxu0 0
    %1516 = vmatpush1.bf16.xpose.msra.mxu0 %v1499
    %1517 = vmatprep.subr.bf16.mxu0 0
    %1518 = vmatpush2.bf16.xpose.msra.mxu0 0
    %1519 = vmatprep.subr.bf16.mxu0 0
    %1520 = vmatpush2.bf16.xpose.msra.mxu0 0
    %1521 = vmatprep.subr.bf16.mxu0 0
    %1522 = vmatpush2.bf16.xpose.msra.mxu0 0
    %1523 = vmatprep.subr.bf16.mxu0 0
    %1524 = vmatpush2.bf16.xpose.msra.mxu0 0
    %1525 = vmatprep.subr.bf16.mxu0 0
    %1526 = vmatpush2.bf16.xpose.msra.mxu0 0
    %1527 = vmatprep.subr.bf16.mxu0 0
    %1528 = vmatpush2.bf16.xpose.msra.mxu0 0
    %1529 = vmatprep.subr.bf16.mxu0 0
    %1530 = vmatpush2.bf16.xpose.msra.mxu0 0
    %1531 = vmatprep.subr.bf16.mxu0 0
    %1532 = vmatpush2.bf16.xpose.msra.mxu0 0
    %1533 = vmatprep.mubr.bf16.mxu0 0
    %1534 = vmatmul.mubr.bf16.gmra.mxu0 %v1496
    %v1535 = vpop.f32.mrf.mxu0
    %v1536 = vadd.f32 0.0, %v1535
    %v1537 = vpop.f32.mrf.mxu0
    %v1538 = vpop.f32.mrf.mxu0
    %v1539 = vpop.f32.mrf.mxu0
    %1540 = vdwg.mxu0
    %v1542 = vsel %vm399, %v1423, 0
    %v1545 = vsel %vm399, %v1435, 0
    %1547 = vmatprep.subr.bf16.mxu0 0
    %1548 = vmatpush1.bf16.xpose.msra.mxu0 0
    %1549 = vmatprep.subr.bf16.mxu0 0
    %1550 = vmatpush1.bf16.xpose.msra.mxu0 0
    %1551 = vmatprep.subr.bf16.mxu0 0
    %1552 = vmatpush1.bf16.xpose.msra.mxu0 0
    %1553 = vmatprep.subr.bf16.mxu0 0
    %1554 = vmatpush1.bf16.xpose.msra.mxu0 0
    %1555 = vmatprep.subr.bf16.mxu0 0
    %1556 = vmatpush1.bf16.xpose.msra.mxu0 0
    %1557 = vmatprep.subr.bf16.mxu0 0
    %1558 = vmatpush1.bf16.xpose.msra.mxu0 0
    %1559 = vmatprep.subr.bf16.mxu0 0
    %1560 = vmatpush1.bf16.xpose.msra.mxu0 0
    %1561 = vmatprep.subr.bf16.mxu0 0
    %1562 = vmatpush1.bf16.xpose.msra.mxu0 %v1545
    %1563 = vmatprep.subr.bf16.mxu0 0
    %1564 = vmatpush2.bf16.xpose.msra.mxu0 0
    %1565 = vmatprep.subr.bf16.mxu0 0
    %1566 = vmatpush2.bf16.xpose.msra.mxu0 0
    %1567 = vmatprep.subr.bf16.mxu0 0
    %1568 = vmatpush2.bf16.xpose.msra.mxu0 0
    %1569 = vmatprep.subr.bf16.mxu0 0
    %1570 = vmatpush2.bf16.xpose.msra.mxu0 0
    %1571 = vmatprep.subr.bf16.mxu0 0
    %1572 = vmatpush2.bf16.xpose.msra.mxu0 0
    %1573 = vmatprep.subr.bf16.mxu0 0
    %1574 = vmatpush2.bf16.xpose.msra.mxu0 0
    %1575 = vmatprep.subr.bf16.mxu0 0
    %1576 = vmatpush2.bf16.xpose.msra.mxu0 0
    %1577 = vmatprep.subr.bf16.mxu0 0
    %1578 = vmatpush2.bf16.xpose.msra.mxu0 0
    %1579 = vmatprep.mubr.bf16.mxu0 0
    %1580 = vmatmul.mubr.bf16.gmra.mxu0 %v1542
    %v1581 = vpop.f32.mrf.mxu0
    %v1582 = vadd.f32 0.0, %v1581
    %v1583 = vpop.f32.mrf.mxu0
    %v1584 = vpop.f32.mrf.mxu0
    %v1585 = vpop.f32.mrf.mxu0
    %1586 = vdwg.mxu0
    %v1588 = vsel %vm399, %v1424, 0
    %v1591 = vsel %vm399, %v1436, 0
    %1593 = vmatprep.subr.bf16.mxu0 0
    %1594 = vmatpush1.bf16.xpose.msra.mxu0 0
    %1595 = vmatprep.subr.bf16.mxu0 0
    %1596 = vmatpush1.bf16.xpose.msra.mxu0 0
    %1597 = vmatprep.subr.bf16.mxu0 0
    %1598 = vmatpush1.bf16.xpose.msra.mxu0 0
    %1599 = vmatprep.subr.bf16.mxu0 0
    %1600 = vmatpush1.bf16.xpose.msra.mxu0 0
    %1601 = vmatprep.subr.bf16.mxu0 0
    %1602 = vmatpush1.bf16.xpose.msra.mxu0 0
    %1603 = vmatprep.subr.bf16.mxu0 0
    %1604 = vmatpush1.bf16.xpose.msra.mxu0 0
    %1605 = vmatprep.subr.bf16.mxu0 0
    %1606 = vmatpush1.bf16.xpose.msra.mxu0 0
    %1607 = vmatprep.subr.bf16.mxu0 0
    %1608 = vmatpush1.bf16.xpose.msra.mxu0 %v1591
    %1609 = vmatprep.subr.bf16.mxu0 0
    %1610 = vmatpush2.bf16.xpose.msra.mxu0 0
    %1611 = vmatprep.subr.bf16.mxu0 0
    %1612 = vmatpush2.bf16.xpose.msra.mxu0 0
    %1613 = vmatprep.subr.bf16.mxu0 0
    %1614 = vmatpush2.bf16.xpose.msra.mxu0 0
    %1615 = vmatprep.subr.bf16.mxu0 0
    %1616 = vmatpush2.bf16.xpose.msra.mxu0 0
    %1617 = vmatprep.subr.bf16.mxu0 0
    %1618 = vmatpush2.bf16.xpose.msra.mxu0 0
    %1619 = vmatprep.subr.bf16.mxu0 0
    %1620 = vmatpush2.bf16.xpose.msra.mxu0 0
    %1621 = vmatprep.subr.bf16.mxu0 0
    %1622 = vmatpush2.bf16.xpose.msra.mxu0 0
    %1623 = vmatprep.subr.bf16.mxu0 0
    %1624 = vmatpush2.bf16.xpose.msra.mxu0 0
    %1625 = vmatprep.mubr.bf16.mxu0 0
    %1626 = vmatmul.mubr.bf16.gmra.mxu0 %v1588
    %v1627 = vpop.f32.mrf.mxu0
    %v1628 = vadd.f32 0.0, %v1627
    %v1629 = vpop.f32.mrf.mxu0
    %v1630 = vpop.f32.mrf.mxu0
    %v1631 = vpop.f32.mrf.mxu0
    %1632 = vdwg.mxu0
    %v1633 = vmul.f32 %v1490, 0.25
    %v1634 = vmul.f32 %v1536, 0.25
    %v1635 = vmul.f32 %v1582, 0.25
    %v1636 = vmul.f32 %v1628, 0.25
    %v1637 = vadd.f32 %v1633, %v595
    %v1638 = vadd.f32 %v1634, %v599
    %v1639 = vadd.f32 %v1635, %v603
    %v1640 = vadd.f32 %v1636, %v607
    %v1641 = vsel %vm616, %v1637, -inf
    %1642 = vmax.xlane.f32.xlu0 %v1641
    %v1643 = vpop.xlane.xlu0 %1642
    %v1644 = vsel %vm616, %v1638, -inf
    %1645 = vmax.xlane.f32.xlu0 %v1644
    %v1646 = vpop.xlane.xlu0 %1645
    %v1647 = vsel %vm616, %v1639, -inf
    %1648 = vmax.xlane.f32.xlu0 %v1647
    %v1649 = vpop.xlane.xlu0 %1648
    %v1650 = vsel %vm616, %v1640, -inf
    %1651 = vmax.xlane.f32.xlu0 %v1650
    %v1652 = vpop.xlane.xlu0 %1651
    %v1653 = vsub.f32 %v1637, %v1643
    %v1654 = vsub.f32 %v1638, %v1646
    %v1655 = vsub.f32 %v1639, %v1649
    %v1656 = vsub.f32 %v1640, %v1652
    %v1657 = vmul.f32 %v1653, 1.442695
    %v1658 = vpow.pop %v1657
    %v1659 = vmul.f32 %v1654, 1.442695
    %v1660 = vpow.pop %v1659
    %v1661 = vmul.f32 %v1655, 1.442695
    %v1662 = vpow.pop %v1661
    %v1663 = vmul.f32 %v1656, 1.442695
    %v1664 = vpow.pop %v1663
    %v1665 = vsel %vm616, %v1658, 0.0
    %1666 = vadd.xlane.f32.xlu0 %v1665
    %v1667 = vpop.xlane.xlu0 %1666
    %v1668 = vsel %vm616, %v1660, 0.0
    %1669 = vadd.xlane.f32.xlu0 %v1668
    %v1670 = vpop.xlane.xlu0 %1669
    %v1671 = vsel %vm616, %v1662, 0.0
    %1672 = vadd.xlane.f32.xlu0 %v1671
    %v1673 = vpop.xlane.xlu0 %1672
    %v1674 = vsel %vm616, %v1664, 0.0
    %1675 = vadd.xlane.f32.xlu0 %v1674
    %v1676 = vpop.xlane.xlu0 %1675
    %v1677 = vrcp.pop %v1667
    %v1678 = vrcp.pop %v1670
    %v1679 = vrcp.pop %v1673
    %v1680 = vrcp.pop %v1676
    %v1681 = vmul.f32 %v1658, %v1677
    %v1682 = vmul.f32 %v1660, %v1678
    %v1683 = vmul.f32 %v1662, %v1679
    %v1684 = vmul.f32 %v1664, %v1680
    %v1685 = vpack.c.bf16 %v1681, %v1681
    %v1686 = vpack.c.bf16 %v1682, %v1682
    %v1687 = vpack.c.bf16 %v1683, %v1683
    %v1688 = vpack.c.bf16 %v1684, %v1684
    %v1690 = vsel %vm616, %v1685, 0
    %v1693 = vsel %vm668, %v1445, 0
    %1695 = vmatprep.subr.bf16.mxu0 0
    %1696 = vmatpush1.bf16.msra.mxu0 0
    %1697 = vmatprep.subr.bf16.mxu0 0
    %1698 = vmatpush1.bf16.msra.mxu0 0
    %1699 = vmatprep.subr.bf16.mxu0 0
    %1700 = vmatpush1.bf16.msra.mxu0 0
    %1701 = vmatprep.subr.bf16.mxu0 0
    %1702 = vmatpush1.bf16.msra.mxu0 0
    %1703 = vmatprep.subr.bf16.mxu0 0
    %1704 = vmatpush1.bf16.msra.mxu0 0
    %1705 = vmatprep.subr.bf16.mxu0 0
    %1706 = vmatpush1.bf16.msra.mxu0 0
    %1707 = vmatprep.subr.bf16.mxu0 0
    %1708 = vmatpush1.bf16.msra.mxu0 0
    %1709 = vmatprep.subr.bf16.mxu0 0
    %1710 = vmatpush1.bf16.msra.mxu0 %v1693
    %1711 = vmatprep.subr.bf16.mxu0 0
    %1712 = vmatpush2.bf16.msra.mxu0 0
    %1713 = vmatprep.subr.bf16.mxu0 0
    %1714 = vmatpush2.bf16.msra.mxu0 0
    %1715 = vmatprep.subr.bf16.mxu0 0
    %1716 = vmatpush2.bf16.msra.mxu0 0
    %1717 = vmatprep.subr.bf16.mxu0 0
    %1718 = vmatpush2.bf16.msra.mxu0 0
    %1719 = vmatprep.subr.bf16.mxu0 0
    %1720 = vmatpush2.bf16.msra.mxu0 0
    %1721 = vmatprep.subr.bf16.mxu0 0
    %1722 = vmatpush2.bf16.msra.mxu0 0
    %1723 = vmatprep.subr.bf16.mxu0 0
    %1724 = vmatpush2.bf16.msra.mxu0 0
    %1725 = vmatprep.subr.bf16.mxu0 0
    %1726 = vmatpush2.bf16.msra.mxu0 0
    %1727 = vmatprep.mubr.bf16.mxu0 0
    %1728 = vmatmul.mubr.bf16.gmra.mxu0 %v1690
    %v1729 = vpop.f32.mrf.mxu0
    %v1730 = vadd.f32 0.0, %v1729
    %v1731 = vpop.f32.mrf.mxu0
    %v1732 = vpop.f32.mrf.mxu0
    %v1733 = vpop.f32.mrf.mxu0
    %1734 = vdwg.mxu0
    %v1736 = vsel %vm616, %v1686, 0
    %v1739 = vsel %vm668, %v1446, 0
    %1741 = vmatprep.subr.bf16.mxu0 0
    %1742 = vmatpush1.bf16.msra.mxu0 0
    %1743 = vmatprep.subr.bf16.mxu0 0
    %1744 = vmatpush1.bf16.msra.mxu0 0
    %1745 = vmatprep.subr.bf16.mxu0 0
    %1746 = vmatpush1.bf16.msra.mxu0 0
    %1747 = vmatprep.subr.bf16.mxu0 0
    %1748 = vmatpush1.bf16.msra.mxu0 0
    %1749 = vmatprep.subr.bf16.mxu0 0
    %1750 = vmatpush1.bf16.msra.mxu0 0
    %1751 = vmatprep.subr.bf16.mxu0 0
    %1752 = vmatpush1.bf16.msra.mxu0 0
    %1753 = vmatprep.subr.bf16.mxu0 0
    %1754 = vmatpush1.bf16.msra.mxu0 0
    %1755 = vmatprep.subr.bf16.mxu0 0
    %1756 = vmatpush1.bf16.msra.mxu0 %v1739
    %1757 = vmatprep.subr.bf16.mxu0 0
    %1758 = vmatpush2.bf16.msra.mxu0 0
    %1759 = vmatprep.subr.bf16.mxu0 0
    %1760 = vmatpush2.bf16.msra.mxu0 0
    %1761 = vmatprep.subr.bf16.mxu0 0
    %1762 = vmatpush2.bf16.msra.mxu0 0
    %1763 = vmatprep.subr.bf16.mxu0 0
    %1764 = vmatpush2.bf16.msra.mxu0 0
    %1765 = vmatprep.subr.bf16.mxu0 0
    %1766 = vmatpush2.bf16.msra.mxu0 0
    %1767 = vmatprep.subr.bf16.mxu0 0
    %1768 = vmatpush2.bf16.msra.mxu0 0
    %1769 = vmatprep.subr.bf16.mxu0 0
    %1770 = vmatpush2.bf16.msra.mxu0 0
    %1771 = vmatprep.subr.bf16.mxu0 0
    %1772 = vmatpush2.bf16.msra.mxu0 0
    %1773 = vmatprep.mubr.bf16.mxu0 0
    %1774 = vmatmul.mubr.bf16.gmra.mxu0 %v1736
    %v1775 = vpop.f32.mrf.mxu0
    %v1776 = vadd.f32 0.0, %v1775
    %v1777 = vpop.f32.mrf.mxu0
    %v1778 = vpop.f32.mrf.mxu0
    %v1779 = vpop.f32.mrf.mxu0
    %1780 = vdwg.mxu0
    %v1782 = vsel %vm616, %v1687, 0
    %v1785 = vsel %vm668, %v1447, 0
    %1787 = vmatprep.subr.bf16.mxu0 0
    %1788 = vmatpush1.bf16.msra.mxu0 0
    %1789 = vmatprep.subr.bf16.mxu0 0
    %1790 = vmatpush1.bf16.msra.mxu0 0
    %1791 = vmatprep.subr.bf16.mxu0 0
    %1792 = vmatpush1.bf16.msra.mxu0 0
    %1793 = vmatprep.subr.bf16.mxu0 0
    %1794 = vmatpush1.bf16.msra.mxu0 0
    %1795 = vmatprep.subr.bf16.mxu0 0
    %1796 = vmatpush1.bf16.msra.mxu0 0
    %1797 = vmatprep.subr.bf16.mxu0 0
    %1798 = vmatpush1.bf16.msra.mxu0 0
    %1799 = vmatprep.subr.bf16.mxu0 0
    %1800 = vmatpush1.bf16.msra.mxu0 0
    %1801 = vmatprep.subr.bf16.mxu0 0
    %1802 = vmatpush1.bf16.msra.mxu0 %v1785
    %1803 = vmatprep.subr.bf16.mxu0 0
    %1804 = vmatpush2.bf16.msra.mxu0 0
    %1805 = vmatprep.subr.bf16.mxu0 0
    %1806 = vmatpush2.bf16.msra.mxu0 0
    %1807 = vmatprep.subr.bf16.mxu0 0
    %1808 = vmatpush2.bf16.msra.mxu0 0
    %1809 = vmatprep.subr.bf16.mxu0 0
    %1810 = vmatpush2.bf16.msra.mxu0 0
    %1811 = vmatprep.subr.bf16.mxu0 0
    %1812 = vmatpush2.bf16.msra.mxu0 0
    %1813 = vmatprep.subr.bf16.mxu0 0
    %1814 = vmatpush2.bf16.msra.mxu0 0
    %1815 = vmatprep.subr.bf16.mxu0 0
    %1816 = vmatpush2.bf16.msra.mxu0 0
    %1817 = vmatprep.subr.bf16.mxu0 0
    %1818 = vmatpush2.bf16.msra.mxu0 0
    %1819 = vmatprep.mubr.bf16.mxu0 0
    %1820 = vmatmul.mubr.bf16.gmra.mxu0 %v1782
    %v1821 = vpop.f32.mrf.mxu0
    %v1822 = vadd.f32 0.0, %v1821
    %v1823 = vpop.f32.mrf.mxu0
    %v1824 = vpop.f32.mrf.mxu0
    %v1825 = vpop.f32.mrf.mxu0
    %1826 = vdwg.mxu0
    %v1828 = vsel %vm616, %v1688, 0
    %v1831 = vsel %vm668, %v1448, 0
    %1833 = vmatprep.subr.bf16.mxu0 0
    %1834 = vmatpush1.bf16.msra.mxu0 0
    %1835 = vmatprep.subr.bf16.mxu0 0
    %1836 = vmatpush1.bf16.msra.mxu0 0
    %1837 = vmatprep.subr.bf16.mxu0 0
    %1838 = vmatpush1.bf16.msra.mxu0 0
    %1839 = vmatprep.subr.bf16.mxu0 0
    %1840 = vmatpush1.bf16.msra.mxu0 0
    %1841 = vmatprep.subr.bf16.mxu0 0
    %1842 = vmatpush1.bf16.msra.mxu0 0
    %1843 = vmatprep.subr.bf16.mxu0 0
    %1844 = vmatpush1.bf16.msra.mxu0 0
    %1845 = vmatprep.subr.bf16.mxu0 0
    %1846 = vmatpush1.bf16.msra.mxu0 0
    %1847 = vmatprep.subr.bf16.mxu0 0
    %1848 = vmatpush1.bf16.msra.mxu0 %v1831
    %1849 = vmatprep.subr.bf16.mxu0 0
    %1850 = vmatpush2.bf16.msra.mxu0 0
    %1851 = vmatprep.subr.bf16.mxu0 0
    %1852 = vmatpush2.bf16.msra.mxu0 0
    %1853 = vmatprep.subr.bf16.mxu0 0
    %1854 = vmatpush2.bf16.msra.mxu0 0
    %1855 = vmatprep.subr.bf16.mxu0 0
    %1856 = vmatpush2.bf16.msra.mxu0 0
    %1857 = vmatprep.subr.bf16.mxu0 0
    %1858 = vmatpush2.bf16.msra.mxu0 0
    %1859 = vmatprep.subr.bf16.mxu0 0
    %1860 = vmatpush2.bf16.msra.mxu0 0
    %1861 = vmatprep.subr.bf16.mxu0 0
    %1862 = vmatpush2.bf16.msra.mxu0 0
    %1863 = vmatprep.subr.bf16.mxu0 0
    %1864 = vmatpush2.bf16.msra.mxu0 0
    %1865 = vmatprep.mubr.bf16.mxu0 0
    %1866 = vmatmul.mubr.bf16.gmra.mxu0 %v1828
    %v1867 = vpop.f32.mrf.mxu0
    %v1868 = vadd.f32 0.0, %v1867
    %v1869 = vpop.f32.mrf.mxu0
    %v1870 = vpop.f32.mrf.mxu0
    %v1871 = vpop.f32.mrf.mxu0
    %1872 = vdwg.mxu0
    %1875 = vrot.lane.b32.xlu0 %v1776, 16
    %v1876 = vpop.permute.xlu0 %1875
    %1877 = vrot.lane.b32.xlu0 %v1868, 16
    %v1878 = vpop.permute.xlu0 %1877
    %v1881 = vsel %vm399, %v1730, %v1876
    %v1882 = vsel %vm399, %v1822, %v1878
    %v1883 = vpack.c.bf16 %v1882, %v1881
    %s1884 = scalar_lea.vmem %s4, 16
    %v1885 = vld [vmem:[%s1884] sm:$0xf]
    %v1886 = vld [vmem:[%s1884 + $0x4] sm:$0xf]
    %v1887 = vld [vmem:[%s1884 + $0x8] sm:$0xf]
    %v1888 = vld [vmem:[%s1884 + $0xc] sm:$0xf]
    %1889 = vrot.lane.b32.xlu0 %v1185, 96
    %v1890 = vpop.permute.xlu0 %1889
    %v1891 = vrot.slane %v1890, 1
    %v1892 = vlaneseq
    %v1893 = vshrl.u32 %v1892, 7
    %v1894 = vsub.s32 0, %v1893
    %v1895 = vrot.slane %v1891, %v1894
    %v1901 = vunpack.c.l.b16 %v1885
    %v1902 = vunpack.c.l.b16 %v1886
    %v1903 = vunpack.c.l.b16 %v1887
    %v1904 = vunpack.c.l.b16 %v1888
    %v1905 = vpack.c.b16 %v1902, %v1901
    %v1906 = vpack.c.b16 %v1904, %v1903
    %v1910 = vsel %vm147, %v1883, 0
    %1912 = vmatprep.subr.bf16.mxu0 0
    %1913 = vmatpush1.bf16.msra.mxu0 0
    %1914 = vmatprep.subr.bf16.mxu0 0
    %1915 = vmatpush1.bf16.msra.mxu0 0
    %1916 = vmatprep.subr.bf16.mxu0 0
    %1917 = vmatpush1.bf16.msra.mxu0 0
    %1918 = vmatprep.subr.bf16.mxu0 0
    %1919 = vmatpush1.bf16.msra.mxu0 0
    %1920 = vmatprep.subr.bf16.mxu0 0
    %1921 = vmatpush1.bf16.msra.mxu0 0
    %1922 = vmatprep.subr.bf16.mxu0 0
    %1923 = vmatpush1.bf16.msra.mxu0 0
    %1924 = vmatprep.subr.bf16.mxu0 0
    %1925 = vmatpush1.bf16.msra.mxu0 %v1906
    %1926 = vmatprep.subr.bf16.mxu0 0
    %1927 = vmatpush1.bf16.msra.mxu0 %v1905
    %1928 = vmatprep.subr.bf16.mxu0 0
    %1929 = vmatpush2.bf16.msra.mxu0 0
    %1930 = vmatprep.subr.bf16.mxu0 0
    %1931 = vmatpush2.bf16.msra.mxu0 0
    %1932 = vmatprep.subr.bf16.mxu0 0
    %1933 = vmatpush2.bf16.msra.mxu0 0
    %1934 = vmatprep.subr.bf16.mxu0 0
    %1935 = vmatpush2.bf16.msra.mxu0 0
    %1936 = vmatprep.subr.bf16.mxu0 0
    %1937 = vmatpush2.bf16.msra.mxu0 0
    %1938 = vmatprep.subr.bf16.mxu0 0
    %1939 = vmatpush2.bf16.msra.mxu0 0
    %1940 = vmatprep.subr.bf16.mxu0 0
    %1941 = vmatpush2.bf16.msra.mxu0 0
    %1942 = vmatprep.subr.bf16.mxu0 0
    %1943 = vmatpush2.bf16.msra.mxu0 0
    %1944 = vmatprep.mubr.bf16.mxu0 0
    %1945 = vmatmul.mubr.bf16.gmra.mxu0 %v1910
    %v1946 = vpop.f32.mrf.mxu0
    %v1947 = vadd.f32 %v1895, %v1946
    %v1948 = vpop.f32.mrf.mxu0
    %v1949 = vpop.f32.mrf.mxu0
    %v1950 = vadd.f32 %v1895, %v1949
    %v1951 = vpop.f32.mrf.mxu0
    %1952 = vdwg.mxu0
    %v1953 = vadd.f32 %v1182, %v1947
    %v1954 = vadd.f32 %v1183, %v1950
    %v1955 = vsel %vm147, %v1953, 0.0
    %1956 = vadd.xlane.f32.xlu0 %v1955
    %v1957 = vpop.xlane.xlu0 %1956
    %v1958 = vsel %vm147, %v1954, 0.0
    %1959 = vadd.xlane.f32.xlu0 %v1958
    %v1960 = vpop.xlane.xlu0 %1959
    %v1961 = vmul.f32 %v1957, %v154
    %v1962 = vmul.f32 %v1960, %v154
    %v1963 = vsub.f32 %v1953, %v1961
    %v1964 = vsub.f32 %v1954, %v1962
    %v1965 = vmul.f32 %v1963, %v1963
    %v1966 = vmul.f32 %v1964, %v1964
    %v1967 = vsel %vm147, %v1965, 0.0
    %1968 = vadd.xlane.f32.xlu0 %v1967
    %v1969 = vpop.xlane.xlu0 %1968
    %v1970 = vsel %vm147, %v1966, 0.0
    %1971 = vadd.xlane.f32.xlu0 %v1970
    %v1972 = vpop.xlane.xlu0 %1971
    %v1973 = vmul.f32 %v1969, %v154
    %v1974 = vmul.f32 %v1972, %v154
    %v1975 = vadd.f32 %v1973, 1e-05
    %v1976 = vadd.f32 %v1974, 1e-05
    %v1977 = vrsqrt.pop %v1975
    %v1978 = vrsqrt.pop %v1976
    %v1979 = vmul.f32 %v1963, %v1977
    %v1980 = vmul.f32 %v1964, %v1978
    %1981 = vrot.lane.b32.xlu0 %v1185, 64
    %v1982 = vpop.permute.xlu0 %1981
    %v1983 = vrot.slane %v1982, 1
    %v1984 = vlaneseq
    %v1985 = vshrl.u32 %v1984, 7
    %v1986 = vsub.s32 0, %v1985
    %v1987 = vrot.slane %v1983, %v1986
    %v1989 = vmul.f32 %v1979, %v1987
    %v1990 = vmul.f32 %v1980, %v1987
    %1991 = vrot.lane.b32.xlu0 %v1185, 32
    %v1992 = vpop.permute.xlu0 %1991
    %v1993 = vrot.slane %v1992, 1
    %v1994 = vlaneseq
    %v1995 = vshrl.u32 %v1994, 7
    %v1996 = vsub.s32 0, %v1995
    %v1997 = vrot.slane %v1993, %v1996
    %v1999 = vadd.f32 %v1989, %v1997
    %v2000 = vadd.f32 %v1990, %v1997
    %v2001 = vpack.c.bf16 %v2000, %v1999
    %s2002 = scalar_lea.vmem %s5, 16
    %v2003 = vld [vmem:[%s2002] sm:$0xf]
    %v2004 = vld [vmem:[%s2002 + $0x4] sm:$0xf]
    %v2005 = vld [vmem:[%s2002 + $0x8] sm:$0xf]
    %v2006 = vld [vmem:[%s2002 + $0xc] sm:$0xf]
    %v2007 = vrot.slane %v1185, 2
    %v2008 = vlaneseq
    %v2009 = vshrl.u32 %v2008, 7
    %v2010 = vsub.s32 0, %v2009
    %v2011 = vrot.slane %v2007, %v2010
    %v2017 = vunpack.c.l.b16 %v2003
    %v2018 = vunpack.c.l.b16 %v2004
    %v2019 = vunpack.c.l.b16 %v2005
    %v2020 = vunpack.c.l.b16 %v2006
    %v2021 = vpack.c.b16 %v2018, %v2017
    %v2022 = vpack.c.b16 %v2020, %v2019
    %v2026 = vsel %vm147, %v2001, 0
    %2028 = vmatprep.subr.bf16.mxu0 0
    %2029 = vmatpush1.bf16.msra.mxu0 0
    %2030 = vmatprep.subr.bf16.mxu0 0
    %2031 = vmatpush1.bf16.msra.mxu0 0
    %2032 = vmatprep.subr.bf16.mxu0 0
    %2033 = vmatpush1.bf16.msra.mxu0 0
    %2034 = vmatprep.subr.bf16.mxu0 0
    %2035 = vmatpush1.bf16.msra.mxu0 0
    %2036 = vmatprep.subr.bf16.mxu0 0
    %2037 = vmatpush1.bf16.msra.mxu0 0
    %2038 = vmatprep.subr.bf16.mxu0 0
    %2039 = vmatpush1.bf16.msra.mxu0 0
    %2040 = vmatprep.subr.bf16.mxu0 0
    %2041 = vmatpush1.bf16.msra.mxu0 %v2022
    %2042 = vmatprep.subr.bf16.mxu0 0
    %2043 = vmatpush1.bf16.msra.mxu0 %v2021
    %2044 = vmatprep.subr.bf16.mxu0 0
    %2045 = vmatpush2.bf16.msra.mxu0 0
    %2046 = vmatprep.subr.bf16.mxu0 0
    %2047 = vmatpush2.bf16.msra.mxu0 0
    %2048 = vmatprep.subr.bf16.mxu0 0
    %2049 = vmatpush2.bf16.msra.mxu0 0
    %2050 = vmatprep.subr.bf16.mxu0 0
    %2051 = vmatpush2.bf16.msra.mxu0 0
    %2052 = vmatprep.subr.bf16.mxu0 0
    %2053 = vmatpush2.bf16.msra.mxu0 0
    %2054 = vmatprep.subr.bf16.mxu0 0
    %2055 = vmatpush2.bf16.msra.mxu0 0
    %2056 = vmatprep.subr.bf16.mxu0 0
    %2057 = vmatpush2.bf16.msra.mxu0 0
    %2058 = vmatprep.subr.bf16.mxu0 0
    %2059 = vmatpush2.bf16.msra.mxu0 0
    %2060 = vmatprep.mubr.bf16.mxu0 0
    %2061 = vmatmul.mubr.bf16.gmra.mxu0 %v2026
    %v2062 = vpop.f32.mrf.mxu0
    %v2063 = vadd.f32 %v2011, %v2062
    %v2064 = vpop.f32.mrf.mxu0
    %v2065 = vpop.f32.mrf.mxu0
    %v2066 = vadd.f32 %v2011, %v2065
    %v2067 = vpop.f32.mrf.mxu0
    %2068 = vdwg.mxu0
    %v2069 = vmul.f32 %v2063, 0.5
    %v2070 = vmul.f32 %v2066, 0.5
    %v2071 = vmul.f32 %v2063, 0.70710677
    %v2072 = vmul.f32 %v2066, 0.70710677
    %vm2073 = vcmp.ge.f32.partialorder %v2071, 0.0
    %vm2074 = vcmp.ge.f32.partialorder %v2072, 0.0
    %v2075 = vsel %vm2073, 1.0, -1.0
    %v2076 = vsel %vm2074, 1.0, -1.0
    %v2077 = vand.u32 2147483647, %v2071
    %v2078 = vand.u32 2147483647, %v2072
    %v2079 = vmul.f32 %v2077, 0.3275911
    %v2080 = vmul.f32 %v2078, 0.3275911
    %v2081 = vadd.f32 %v2079, 1.0
    %v2082 = vadd.f32 %v2080, 1.0
    %v2083 = vrcp.pop %v2081
    %v2084 = vmul.f32 1.0, %v2083
    %v2085 = vrcp.pop %v2082
    %v2086 = vmul.f32 1.0, %v2085
    %v2087 = vmul.f32 %v2084, 1.0614054
    %v2088 = vmul.f32 %v2086, 1.0614054
    %v2089 = vadd.f32 %v2087, -1.4531521
    %v2090 = vadd.f32 %v2088, -1.4531521
    %v2091 = vmul.f32 %v2089, %v2084
    %v2092 = vmul.f32 %v2090, %v2086
    %v2093 = vadd.f32 %v2091, 1.4214138
    %v2094 = vadd.f32 %v2092, 1.4214138
    %v2095 = vmul.f32 %v2093, %v2084
    %v2096 = vmul.f32 %v2094, %v2086
    %v2097 = vadd.f32 %v2095, -0.28449672
    %v2098 = vadd.f32 %v2096, -0.28449672
    %v2099 = vmul.f32 %v2097, %v2084
    %v2100 = vmul.f32 %v2098, %v2086
    %v2101 = vadd.f32 %v2099, 0.2548296
    %v2102 = vadd.f32 %v2100, 0.2548296
    %v2103 = vmul.f32 %v2101, %v2084
    %v2104 = vmul.f32 %v2102, %v2086
    %v2105 = vsub.f32 0.0, %v2077
    %v2106 = vsub.f32 0.0, %v2078
    %v2107 = vmul.f32 %v2105, %v2077
    %v2108 = vmul.f32 %v2106, %v2078
    %v2109 = vmul.f32 %v2107, 1.442695
    %v2110 = vpow.pop %v2109
    %v2111 = vmul.f32 %v2108, 1.442695
    %v2112 = vpow.pop %v2111
    %v2113 = vmul.f32 %v2103, %v2110
    %v2114 = vmul.f32 %v2104, %v2112
    %v2115 = vsub.f32 1.0, %v2113
    %v2116 = vsub.f32 1.0, %v2114
    %v2117 = vmul.f32 %v2075, %v2115
    %v2118 = vmul.f32 %v2076, %v2116
    %v2119 = vadd.f32 %v2117, 1.0
    %v2120 = vadd.f32 %v2118, 1.0
    %v2121 = vmul.f32 %v2069, %v2119
    %v2122 = vmul.f32 %v2070, %v2120
    %v2123 = vpack.c.bf16 %v2122, %v2121
    %s2124 = scalar_lea.vmem %s6, 32
    %v2125 = vld [vmem:[%s2124] sm:$0xf]
    %v2126 = vld [vmem:[%s2124 + $0x4] sm:$0xf]
    %v2127 = vld [vmem:[%s2124 + $0x8] sm:$0xf]
    %v2128 = vld [vmem:[%s2124 + $0xc] sm:$0xf]
    %v2129 = vld [vmem:[%s2124 + $0x10] sm:$0xf]
    %v2130 = vld [vmem:[%s2124 + $0x14] sm:$0xf]
    %v2131 = vld [vmem:[%s2124 + $0x18] sm:$0xf]
    %v2132 = vld [vmem:[%s2124 + $0x1c] sm:$0xf]
    %v2133 = vrot.slane %v1982, 2
    %v2134 = vlaneseq
    %v2135 = vshrl.u32 %v2134, 7
    %v2136 = vsub.s32 0, %v2135
    %v2137 = vrot.slane %v2133, %v2136
    %v2147 = vunpack.c.l.b16 %v2125
    %v2148 = vunpack.c.l.b16 %v2126
    %v2149 = vunpack.c.l.b16 %v2127
    %v2150 = vunpack.c.l.b16 %v2128
    %v2151 = vunpack.c.l.b16 %v2129
    %v2152 = vunpack.c.l.b16 %v2130
    %v2153 = vunpack.c.l.b16 %v2131
    %v2154 = vunpack.c.l.b16 %v2132
    %v2155 = vpack.c.b16 %v2148, %v2147
    %v2156 = vpack.c.b16 %v2150, %v2149
    %v2157 = vpack.c.b16 %v2152, %v2151
    %v2158 = vpack.c.b16 %v2154, %v2153
    %v2164 = vsel %vm1137, %v2123, 0
    %2166 = vmatprep.subr.bf16.mxu0 0
    %2167 = vmatpush1.bf16.msra.mxu0 0
    %2168 = vmatprep.subr.bf16.mxu0 0
    %2169 = vmatpush1.bf16.msra.mxu0 0
    %2170 = vmatprep.subr.bf16.mxu0 0
    %2171 = vmatpush1.bf16.msra.mxu0 0
    %2172 = vmatprep.subr.bf16.mxu0 0
    %2173 = vmatpush1.bf16.msra.mxu0 0
    %2174 = vmatprep.subr.bf16.mxu0 0
    %2175 = vmatpush1.bf16.msra.mxu0 %v2158
    %2176 = vmatprep.subr.bf16.mxu0 0
    %2177 = vmatpush1.bf16.msra.mxu0 %v2157
    %2178 = vmatprep.subr.bf16.mxu0 0
    %2179 = vmatpush1.bf16.msra.mxu0 %v2156
    %2180 = vmatprep.subr.bf16.mxu0 0
    %2181 = vmatpush1.bf16.msra.mxu0 %v2155
    %2182 = vmatprep.subr.bf16.mxu0 0
    %2183 = vmatpush2.bf16.msra.mxu0 0
    %2184 = vmatprep.subr.bf16.mxu0 0
    %2185 = vmatpush2.bf16.msra.mxu0 0
    %2186 = vmatprep.subr.bf16.mxu0 0
    %2187 = vmatpush2.bf16.msra.mxu0 0
    %2188 = vmatprep.subr.bf16.mxu0 0
    %2189 = vmatpush2.bf16.msra.mxu0 0
    %2190 = vmatprep.subr.bf16.mxu0 0
    %2191 = vmatpush2.bf16.msra.mxu0 0
    %2192 = vmatprep.subr.bf16.mxu0 0
    %2193 = vmatpush2.bf16.msra.mxu0 0
    %2194 = vmatprep.subr.bf16.mxu0 0
    %2195 = vmatpush2.bf16.msra.mxu0 0
    %2196 = vmatprep.subr.bf16.mxu0 0
    %2197 = vmatpush2.bf16.msra.mxu0 0
    %2198 = vmatprep.mubr.bf16.mxu0 0
    %2199 = vmatmul.mubr.bf16.gmra.mxu0 %v2164
    %v2200 = vpop.f32.mrf.mxu0
    %v2201 = vadd.f32 %v2137, %v2200
    %v2202 = vpop.f32.mrf.mxu0
    %v2203 = vpop.f32.mrf.mxu0
    %v2204 = vadd.f32 %v2137, %v2203
    %v2205 = vpop.f32.mrf.mxu0
    %2206 = vdwg.mxu0
    %v2207 = vadd.f32 %v1953, %v2201
    %v2208 = vadd.f32 %v1954, %v2204
    %v2209 = vld [vmem:[#allocation5 + $0x1] sm:$0x1]
    %v2210 = vld [vmem:[#allocation5 + $0x2] sm:$0x1]
    %v2211 = vsel %vm147, %v2207, 0.0
    %2212 = vadd.xlane.f32.xlu0 %v2211
    %v2213 = vpop.xlane.xlu0 %2212
    %v2214 = vsel %vm147, %v2208, 0.0
    %2215 = vadd.xlane.f32.xlu0 %v2214
    %v2216 = vpop.xlane.xlu0 %2215
    %v2217 = vmul.f32 %v2213, %v154
    %v2218 = vmul.f32 %v2216, %v154
    %v2219 = vsub.f32 %v2207, %v2217
    %v2220 = vsub.f32 %v2208, %v2218
    %v2221 = vmul.f32 %v2219, %v2219
    %v2222 = vmul.f32 %v2220, %v2220
    %v2223 = vsel %vm147, %v2221, 0.0
    %2224 = vadd.xlane.f32.xlu0 %v2223
    %v2225 = vpop.xlane.xlu0 %2224
    %v2226 = vsel %vm147, %v2222, 0.0
    %2227 = vadd.xlane.f32.xlu0 %v2226
    %v2228 = vpop.xlane.xlu0 %2227
    %v2229 = vmul.f32 %v2225, %v154
    %v2230 = vmul.f32 %v2228, %v154
    %v2231 = vadd.f32 %v2229, 1e-05
    %v2232 = vadd.f32 %v2230, 1e-05
    %v2233 = vrsqrt.pop %v2231
    %v2234 = vrsqrt.pop %v2232
    %v2235 = vmul.f32 %v2219, %v2233
    %v2236 = vmul.f32 %v2220, %v2234
    %v2237 = vlaneseq
    %v2238 = vshrl.u32 %v2237, 7
    %v2239 = vsub.s32 0, %v2238
    %v2240 = vrot.slane %v2209, %v2239
    %v2241 = vmul.f32 %v2235, %v2240
    %v2242 = vmul.f32 %v2236, %v2240
    %v2243 = vlaneseq
    %v2244 = vshrl.u32 %v2243, 7
    %v2245 = vsub.s32 0, %v2244
    %v2246 = vrot.slane %v2210, %v2245
    %v2247 = vadd.f32 %v2241, %v2246
    %v2248 = vadd.f32 %v2242, %v2246
    %2249 = vst.msk [vmem:[#allocation7] sm:$0xff] %vm147, %v2247
    %2250 = vst.msk [vmem:[#allocation7 + $0x8] sm:$0xff] %vm147, %v2248
    // Predicated region
    $region46: #{jet_backbone_forward.1} parent=1 // pred_check
      _
    $region47: #{jet_backbone_forward.1} parent=1 // pred_check_branch
      %2252 = sbr.rel (0) target = $region49
    $region48: #{jet_backbone_forward.1} parent=1 // pred_region
      %s2254 = ssub.s32 256, 256
      %2255 = vsyncadd [#allocation4], %s2254
      %s2256 = sshll.u32 [#allocation7], 4
      %s2257 = int_to_ptr.vmem [resolvable:$true] %s2256
      %2262 = dma.vmem_to_hbm [thread:$0]  %s2257, 256, %s9, [#allocation4], 128, 128, 8
    $region49: #{jet_backbone_forward.1} parent=1 // pred_fallthru
      _
    // Predicated region
    $region50: #{jet_backbone_forward.1} parent=1 // pred_check
      _
    $region51: #{jet_backbone_forward.1} parent=1 // pred_check_branch
      %2264 = sbr.rel (0) target = $region53
    $region52: #{jet_backbone_forward.1} parent=1 // pred_region
      %2265 = dma.done [#allocation4], 256
    $region53: #{jet_backbone_forward.1} parent=1 // pred_fallthru
      _
    %2266 = vsyncpa [#allocation3], 1
    %2267 = vsyncpa [#allocation6], 1
    %2268 = vsyncpa [#allocation4], 1

</llo_original>
